<compile_context>
chip_gen: v6e
topology: v6e:2x2x1
jax: 0.10.0
libtpu: 0.0.40
codegen_flags: <defaults>
</compile_context>

<pallas_src>
import jax
import jax.numpy as jnp
from jax.experimental import pallas as pl
from jax.experimental.pallas import tpu as pltpu  # noqa: F401  (TPU-specific knobs)

C_IN = 1792
C_OUT = 128
BN_EPS = 1e-5


def _fused_kernel(x_ref, w_ref, gb_ref, o_ref):
    # x_ref:  (C_IN, HW)    f32  pre-ReLU activations (channels on sublanes)
    # w_ref:  (C_OUT, C_IN) bf16 1x1 conv weight, pre-laid-out at module init
    # gb_ref: (2, C_OUT)    f32  row 0 = gamma, row 1 = beta (lane-dense)
    # o_ref:  (C_OUT, HW)   f32
    x = jnp.maximum(x_ref[...], 0.0).astype(jnp.bfloat16)   # relu192, bf16 for MXU
    w = w_ref[...].astype(jnp.bfloat16)                      # no-op for bf16 storage
    # conv2d192 (1x1) as a single-pass bf16 x bf16 MXU matmul, f32 accumulation.
    y = jnp.dot(w, x, preferred_element_type=jnp.float32)    # (C_OUT, HW) f32

    # batchnorm2d193, training-mode forward: biased batch stats per channel.
    # One-pass stats: sum and sum-of-squares over the HW (lane) axis.
    hw = y.shape[1]
    inv_cnt = 1.0 / hw
    s1 = jnp.sum(y, axis=1, keepdims=True)                   # (C_OUT, 1)
    s2 = jnp.sum(y * y, axis=1, keepdims=True)               # (C_OUT, 1)
    mean = s1 * inv_cnt
    var = jnp.maximum(s2 * inv_cnt - mean * mean, 0.0)       # clamp cancellation

    # gamma/beta arrive as two lane-dense 128-wide rows; relayout lanes->sublanes
    # into (C_OUT, 1) columns via a one-hot mask + lane reduction (VPU/XLU slots,
    # hidden behind the MXU matmul; avoids a tiny unsupported transpose).
    gb = gb_ref[...]                                         # (2, C_OUT)
    sub = jax.lax.broadcasted_iota(jnp.int32, (C_OUT, C_OUT), 0)
    lane = jax.lax.broadcasted_iota(jnp.int32, (C_OUT, C_OUT), 1)
    onehot = (sub == lane).astype(jnp.float32)
    gamma = jnp.sum(onehot * gb[0:1, :], axis=1, keepdims=True)  # (C_OUT, 1)
    beta = jnp.sum(onehot * gb[1:2, :], axis=1, keepdims=True)   # (C_OUT, 1)

    scale = gamma * jax.lax.rsqrt(var + BN_EPS)              # rsqrt -> EUP slot
    shift = beta - mean * scale

    o_ref[...] = jnp.maximum(y * scale + shift, 0.0)         # relu193


def prepare_params(w_conv, gamma, beta, weight_dtype=jnp.bfloat16):
    """One-time (module-init) parameter layout: NOT part of the per-call path.

    w_conv: (C_OUT, C_IN, 1, 1) -> (C_OUT, C_IN), stored bf16 to halve the
    weight DMA (pass weight_dtype=jnp.float32 for f32 storage; the kernel still
    feeds the MXU bf16 operands).
    gamma/beta -> one lane-dense (2, C_OUT) f32 slab (single ~1 KiB DMA).
    """
    w2d = w_conv.reshape(C_OUT, C_IN).astype(weight_dtype)        # no transpose needed
    gb = jnp.stack(
        [gamma.reshape(C_OUT).astype(jnp.float32),
         beta.reshape(C_OUT).astype(jnp.float32)], axis=0)        # (2, C_OUT)
    return w2d, gb


def fused_relu_conv_bn_relu(x_nchw, w2d, gb):
    """x_nchw: (1, C_IN, H, W) f32; w2d/gb from prepare_params()."""
    n, c_in, h, w = x_nchw.shape
    assert n == 1 and c_in == C_IN, "kernel is specialized for N=1, C_IN=1792"
    hw = h * w

    # N=1 NCHW -> (C_IN, HW): pure metadata reshape, zero data movement.
    x2d = x_nchw.reshape(c_in, hw).astype(jnp.float32)

    bytes_accessed = (
        x2d.size * 4 + w2d.size * w2d.dtype.itemsize + gb.size * 4 + C_OUT * hw * 4
    )
    # Grid-less, single full-array block: ~0.9 MB traffic / 22.5 MFLOP — any
    # grid (K over C_IN, M over HW, or multi-core split) only adds per-step
    # overhead at this shape.
    out2d = pl.pallas_call(
        _fused_kernel,
        out_shape=jax.ShapeDtypeStruct((C_OUT, hw), jnp.float32),
        in_specs=[
            pl.BlockSpec((c_in, hw), lambda: (0, 0)),      # x, full block (~351 KB)
            pl.BlockSpec((C_OUT, c_in), lambda: (0, 0)),   # weight resident (~448 KB bf16)
            pl.BlockSpec((2, C_OUT), lambda: (0, 0)),      # gamma/beta, one dense row pair
        ],
        out_specs=pl.BlockSpec((C_OUT, hw), lambda: (0, 0)),
        cost_estimate=pl.CostEstimate(
            flops=2 * C_OUT * C_IN * hw,      # ~22.5 MFLOP
            transcendentals=C_OUT,            # rsqrt per channel
            bytes_accessed=bytes_accessed,    # ~0.9 MB
        ),
    )(x2d, w2d, gb)

    # (C_OUT, HW) -> (1, C_OUT, H, W): again a free reshape.
    return out2d.reshape(1, C_OUT, h, w)


def _reference(x_nchw, w2d, gamma, beta):
    """Pure-JAX reference with matching precision (bf16 operands, f32 accum)."""
    x = jnp.maximum(x_nchw, 0.0).astype(jnp.bfloat16)
    wf = w2d.astype(jnp.bfloat16)                                  # (C_OUT, C_IN)
    y = jnp.einsum("nchw,oc->nohw", x, wf, preferred_element_type=jnp.float32)
    mean = jnp.mean(y, axis=(0, 2, 3), keepdims=True)
    var = jnp.mean((y - mean) ** 2, axis=(0, 2, 3), keepdims=True)  # biased
    y_hat = (y - mean) / jnp.sqrt(var + BN_EPS)
    out = y_hat * gamma.reshape(1, -1, 1, 1) + beta.reshape(1, -1, 1, 1)
    return jnp.maximum(out, 0.0)


if __name__ == "__main__":
    key = jax.random.PRNGKey(0)
    k_x, k_w, k_g, k_b = jax.random.split(key, 4)

    # Shapes implied by the module: N=1, C_in=1792, H=W=7 ; 1x1 conv -> C_out=128
    x = jax.random.normal(k_x, (1, C_IN, 7, 7), dtype=jnp.float32)
    w_conv = jax.random.normal(k_w, (C_OUT, C_IN, 1, 1), dtype=jnp.float32) * 0.02
    gamma = 1.0 + 0.1 * jax.random.normal(k_g, (C_OUT,), dtype=jnp.float32)
    beta = 0.1 * jax.random.normal(k_b, (C_OUT,), dtype=jnp.float32)

    # One-time weight layout / cast (hoisted out of the per-call path).
    w2d, gb = prepare_params(w_conv, gamma, beta)

    fused = jax.jit(fused_relu_conv_bn_relu)
    out = jax.block_until_ready(fused(x, w2d, gb))

    ref = _reference(x, w2d, gamma, beta)
    assert out.shape == (1, C_OUT, 7, 7)
    max_err = float(jnp.max(jnp.abs(out - ref)))
    assert max_err < 2e-3, f"max abs err {max_err}"

    # TODO(synk): BatchNorm running_mean/running_var buffer updates (momentum=0.1)
    # are a training-side side effect and are not emitted; the forward output
    # (which uses batch statistics) is fully reproduced.
    print("KERNEL_OK")
</pallas_src>

<mosaic_0001>
module attributes {stable_mosaic.version = 11 : i64} {
  func.func @_fused_kernel(%arg0: memref<1792x49xf32, #tpu.memory_space<vmem>>, %arg1: memref<128x1792xbf16, #tpu.memory_space<vmem>>, %arg2: memref<2x128xf32, #tpu.memory_space<vmem>>, %arg3: memref<128x49xf32, #tpu.memory_space<vmem>>) attributes {dimension_semantics = [], scalar_prefetch = 0 : i64, scratch_operands = 0 : i64, tpu.core_type = #tpu.core_type<tc>} {
    %c0 = arith.constant 0 : index
    %c0_0 = arith.constant 0 : index
    %0 = vector.load %arg0[%c0, %c0_0] : memref<1792x49xf32, #tpu.memory_space<vmem>>, vector<1792x49xf32>
    %cst = arith.constant 0.000000e+00 : f32
    %1 = vector.broadcast %cst : f32 to vector<1792x49xf32>
    %2 = arith.maximumf %0, %1 : vector<1792x49xf32>
    %3 = arith.truncf %2 : vector<1792x49xf32> to vector<1792x49xbf16>
    %c0_1 = arith.constant 0 : index
    %c0_2 = arith.constant 0 : index
    %4 = vector.load %arg1[%c0_1, %c0_2] : memref<128x1792xbf16, #tpu.memory_space<vmem>>, vector<128x1792xbf16>
    %cst_3 = arith.constant dense<0.000000e+00> : vector<128x49xf32>
    %5 = tpu.matmul %4, %3, %cst_3 {dimension_numbers = #tpu.dot_dimension_numbers<[1], [0], [0], [1], [0, 0, 1, 1], [], []>} : vector<128x1792xbf16>, vector<1792x49xbf16>, vector<128x49xf32> -> vector<128x49xf32>
    %cst_4 = arith.constant dense<0.000000e+00> : vector<128xf32>
    %6 = vector.multi_reduction <add>, %5, %cst_4 [1] : vector<128x49xf32> to vector<128xf32>
    %7 = vector.shape_cast %6 : vector<128xf32> to vector<128x1xf32>
    %8 = arith.mulf %5, %5 : vector<128x49xf32>
    %cst_5 = arith.constant dense<0.000000e+00> : vector<128xf32>
    %9 = vector.multi_reduction <add>, %8, %cst_5 [1] : vector<128x49xf32> to vector<128xf32>
    %10 = vector.shape_cast %9 : vector<128xf32> to vector<128x1xf32>
    %cst_6 = arith.constant 0.0204081628 : f32
    %11 = vector.broadcast %cst_6 : f32 to vector<128x1xf32>
    %12 = arith.mulf %7, %11 : vector<128x1xf32>
    %cst_7 = arith.constant 0.0204081628 : f32
    %13 = vector.broadcast %cst_7 : f32 to vector<128x1xf32>
    %14 = arith.mulf %10, %13 : vector<128x1xf32>
    %15 = arith.mulf %12, %12 : vector<128x1xf32>
    %16 = arith.subf %14, %15 : vector<128x1xf32>
    %cst_8 = arith.constant 0.000000e+00 : f32
    %17 = vector.broadcast %cst_8 : f32 to vector<128x1xf32>
    %18 = arith.maximumf %16, %17 : vector<128x1xf32>
    %c0_9 = arith.constant 0 : index
    %c0_10 = arith.constant 0 : index
    %19 = vector.load %arg2[%c0_9, %c0_10] : memref<2x128xf32, #tpu.memory_space<vmem>>, vector<2x128xf32>
    %20 = tpu.iota {dimensions = array<i32: 0>} : vector<128x128xi32>
    %21 = tpu.iota {dimensions = array<i32: 1>} : vector<128x128xi32>
    %22 = arith.cmpi eq, %20, %21 : vector<128x128xi32>
    %23 = arith.extui %22 : vector<128x128xi1> to vector<128x128xi32>
    %24 = arith.sitofp %23 : vector<128x128xi32> to vector<128x128xf32>
    %25 = vector.extract_strided_slice %19 {offsets = [0, 0], sizes = [1, 128], strides = [1, 1]} : vector<2x128xf32> to vector<1x128xf32>
    %26 = vector.broadcast %25 : vector<1x128xf32> to vector<128x128xf32>
    %27 = arith.mulf %24, %26 : vector<128x128xf32>
    %cst_11 = arith.constant dense<0.000000e+00> : vector<128xf32>
    %28 = vector.multi_reduction <add>, %27, %cst_11 [1] : vector<128x128xf32> to vector<128xf32>
    %29 = vector.shape_cast %28 : vector<128xf32> to vector<128x1xf32>
    %30 = vector.extract_strided_slice %19 {offsets = [1, 0], sizes = [1, 128], strides = [1, 1]} : vector<2x128xf32> to vector<1x128xf32>
    %31 = vector.broadcast %30 : vector<1x128xf32> to vector<128x128xf32>
    %32 = arith.mulf %24, %31 : vector<128x128xf32>
    %cst_12 = arith.constant dense<0.000000e+00> : vector<128xf32>
    %33 = vector.multi_reduction <add>, %32, %cst_12 [1] : vector<128x128xf32> to vector<128xf32>
    %34 = vector.shape_cast %33 : vector<128xf32> to vector<128x1xf32>
    %cst_13 = arith.constant 9.99999974E-6 : f32
    %35 = vector.broadcast %cst_13 : f32 to vector<128x1xf32>
    %36 = arith.addf %18, %35 : vector<128x1xf32>
    %37 = math.rsqrt %36 : vector<128x1xf32>
    %38 = arith.mulf %29, %37 : vector<128x1xf32>
    %39 = arith.mulf %12, %38 : vector<128x1xf32>
    %40 = arith.subf %34, %39 : vector<128x1xf32>
    %41 = vector.broadcast %38 : vector<128x1xf32> to vector<128x49xf32>
    %42 = arith.mulf %5, %41 : vector<128x49xf32>
    %43 = vector.broadcast %40 : vector<128x1xf32> to vector<128x49xf32>
    %44 = arith.addf %42, %43 : vector<128x49xf32>
    %cst_14 = arith.constant 0.000000e+00 : f32
    %45 = vector.broadcast %cst_14 : f32 to vector<128x49xf32>
    %46 = arith.maximumf %44, %45 : vector<128x49xf32>
    %c0_15 = arith.constant 0 : index
    %c0_16 = arith.constant 0 : index
    %47 = vector.load %arg3[%c0_15, %c0_16] : memref<128x49xf32, #tpu.memory_space<vmem>>, vector<128x49xf32>
    tpu.vector_store %arg3[%c0_15, %c0_16], %46 {strides = array<i32>} : memref<128x49xf32, #tpu.memory_space<vmem>>, vector<128x49xf32>,
    return
  }
}

</mosaic_0001>

<llo_original>
// kernel: fused_relu_conv_bn_relu.1
$region0: #{fused_relu_conv_bn_relu.1}
  #allocation0 [shape = 'u32[]', space=smem, size = 0x4, offset = 0x4, fixed_abs, tag = 'smem constant byte address 0x4 - core index']
  #allocation1 [shape = 'u32[144,128]{1,0:T(1,128)}', space=vmem, size = 0x12000, scoped, tag = 'internal scratch']
  %s0 = inlined_call_operand.vmem [shape: f32[1792,49], index: 0, kind: input, shape index: {}]
  %s1 = inlined_call_operand.vmem [shape: bf16[128,1792], index: 1, kind: input, shape index: {}]
  %s2 = inlined_call_operand.vmem [shape: f32[2,128], index: 2, kind: input, shape index: {}]
  %s3 = inlined_call_operand.vmem [shape: f32[128,49], index: 3, kind: output, shape index: {}]
  %s4 = sld [smem:[#allocation0]]
  $region22: #{fused_relu_conv_bn_relu.1} parent=0
    _
  %s6 = ssub.s32 1, %s4
  %s7 = scalar_select 0, %s6, %s4
  // Predicated region
  $region2: #{fused_relu_conv_bn_relu.1} parent=0 // pred_check
    _
  $region3: #{fused_relu_conv_bn_relu.1} parent=0 // pred_check_branch
    %9 = sbr.rel (0) target = $region5
  $region4: #{fused_relu_conv_bn_relu.1} parent=0 // pred_region
    _
  $region5: #{fused_relu_conv_bn_relu.1} parent=0 // pred_fallthru
    _
  // Predicated region
  $region6: #{fused_relu_conv_bn_relu.1} parent=0 // pred_check
    _
  $region7: #{fused_relu_conv_bn_relu.1} parent=0 // pred_check_branch
    %11 = sbr.rel (0) target = $region9
  $region8: #{fused_relu_conv_bn_relu.1} parent=0 // pred_region
    _
  $region9: #{fused_relu_conv_bn_relu.1} parent=0 // pred_fallthru
    _
  // Predicated region
  $region10: #{fused_relu_conv_bn_relu.1} parent=0 // pred_check
    _
  $region11: #{fused_relu_conv_bn_relu.1} parent=0 // pred_check_branch
    %13 = sbr.rel (0) target = $region13
  $region12: #{fused_relu_conv_bn_relu.1} parent=0 // pred_region
    _
  $region13: #{fused_relu_conv_bn_relu.1} parent=0 // pred_fallthru
    _
  %v15 = vld [vmem:[%s0] sm:$0xff]
  %v16 = vld [vmem:[%s0 + $0x8] sm:$0xff]
  %v17 = vld [vmem:[%s0 + $0x10] sm:$0xff]
  %v18 = vld [vmem:[%s0 + $0x18] sm:$0xff]
  %v19 = vld [vmem:[%s0 + $0x20] sm:$0xff]
  %v20 = vld [vmem:[%s0 + $0x28] sm:$0xff]
  %v21 = vld [vmem:[%s0 + $0x30] sm:$0xff]
  %v22 = vld [vmem:[%s0 + $0x38] sm:$0xff]
  %v23 = vld [vmem:[%s0 + $0x40] sm:$0xff]
  %v24 = vld [vmem:[%s0 + $0x48] sm:$0xff]
  %v25 = vld [vmem:[%s0 + $0x50] sm:$0xff]
  %v26 = vld [vmem:[%s0 + $0x58] sm:$0xff]
  %v27 = vld [vmem:[%s0 + $0x60] sm:$0xff]
  %v28 = vld [vmem:[%s0 + $0x68] sm:$0xff]
  %v29 = vld [vmem:[%s0 + $0x70] sm:$0xff]
  %v30 = vld [vmem:[%s0 + $0x78] sm:$0xff]
  %v31 = vld [vmem:[%s0 + $0x80] sm:$0xff]
  %v32 = vld [vmem:[%s0 + $0x88] sm:$0xff]
  %v33 = vld [vmem:[%s0 + $0x90] sm:$0xff]
  %v34 = vld [vmem:[%s0 + $0x98] sm:$0xff]
  %v35 = vld [vmem:[%s0 + $0xa0] sm:$0xff]
  %v36 = vld [vmem:[%s0 + $0xa8] sm:$0xff]
  %v37 = vld [vmem:[%s0 + $0xb0] sm:$0xff]
  %v38 = vld [vmem:[%s0 + $0xb8] sm:$0xff]
  %v39 = vld [vmem:[%s0 + $0xc0] sm:$0xff]
  %v40 = vld [vmem:[%s0 + $0xc8] sm:$0xff]
  %v41 = vld [vmem:[%s0 + $0xd0] sm:$0xff]
  %v42 = vld [vmem:[%s0 + $0xd8] sm:$0xff]
  %v43 = vld [vmem:[%s0 + $0xe0] sm:$0xff]
  %v44 = vld [vmem:[%s0 + $0xe8] sm:$0xff]
  %v45 = vld [vmem:[%s0 + $0xf0] sm:$0xff]
  %v46 = vld [vmem:[%s0 + $0xf8] sm:$0xff]
  %v47 = vld [vmem:[%s0 + $0x100] sm:$0xff]
  %v48 = vld [vmem:[%s0 + $0x108] sm:$0xff]
  %v49 = vld [vmem:[%s0 + $0x110] sm:$0xff]
  %v50 = vld [vmem:[%s0 + $0x118] sm:$0xff]
  %v51 = vld [vmem:[%s0 + $0x120] sm:$0xff]
  %v52 = vld [vmem:[%s0 + $0x128] sm:$0xff]
  %v53 = vld [vmem:[%s0 + $0x130] sm:$0xff]
  %v54 = vld [vmem:[%s0 + $0x138] sm:$0xff]
  %v55 = vld [vmem:[%s0 + $0x140] sm:$0xff]
  %v56 = vld [vmem:[%s0 + $0x148] sm:$0xff]
  %v57 = vld [vmem:[%s0 + $0x150] sm:$0xff]
  %v58 = vld [vmem:[%s0 + $0x158] sm:$0xff]
  %v59 = vld [vmem:[%s0 + $0x160] sm:$0xff]
  %v60 = vld [vmem:[%s0 + $0x168] sm:$0xff]
  %v61 = vld [vmem:[%s0 + $0x170] sm:$0xff]
  %v62 = vld [vmem:[%s0 + $0x178] sm:$0xff]
  %v63 = vld [vmem:[%s0 + $0x180] sm:$0xff]
  %v64 = vld [vmem:[%s0 + $0x188] sm:$0xff]
  %v65 = vld [vmem:[%s0 + $0x190] sm:$0xff]
  %v66 = vld [vmem:[%s0 + $0x198] sm:$0xff]
  %v67 = vld [vmem:[%s0 + $0x1a0] sm:$0xff]
  %v68 = vld [vmem:[%s0 + $0x1a8] sm:$0xff]
  %v69 = vld [vmem:[%s0 + $0x1b0] sm:$0xff]
  %v70 = vld [vmem:[%s0 + $0x1b8] sm:$0xff]
  %v71 = vld [vmem:[%s0 + $0x1c0] sm:$0xff]
  %v72 = vld [vmem:[%s0 + $0x1c8] sm:$0xff]
  %v73 = vld [vmem:[%s0 + $0x1d0] sm:$0xff]
  %v74 = vld [vmem:[%s0 + $0x1d8] sm:$0xff]
  %v75 = vld [vmem:[%s0 + $0x1e0] sm:$0xff]
  %v76 = vld [vmem:[%s0 + $0x1e8] sm:$0xff]
  %v77 = vld [vmem:[%s0 + $0x1f0] sm:$0xff]
  %v78 = vld [vmem:[%s0 + $0x1f8] sm:$0xff]
  %v79 = vld [vmem:[%s0 + $0x200] sm:$0xff]
  %v80 = vld [vmem:[%s0 + $0x208] sm:$0xff]
  %v81 = vld [vmem:[%s0 + $0x210] sm:$0xff]
  %v82 = vld [vmem:[%s0 + $0x218] sm:$0xff]
  %v83 = vld [vmem:[%s0 + $0x220] sm:$0xff]
  %v84 = vld [vmem:[%s0 + $0x228] sm:$0xff]
  %v85 = vld [vmem:[%s0 + $0x230] sm:$0xff]
  %v86 = vld [vmem:[%s0 + $0x238] sm:$0xff]
  %v87 = vld [vmem:[%s0 + $0x240] sm:$0xff]
  %v88 = vld [vmem:[%s0 + $0x248] sm:$0xff]
  %v89 = vld [vmem:[%s0 + $0x250] sm:$0xff]
  %v90 = vld [vmem:[%s0 + $0x258] sm:$0xff]
  %v91 = vld [vmem:[%s0 + $0x260] sm:$0xff]
  %v92 = vld [vmem:[%s0 + $0x268] sm:$0xff]
  %v93 = vld [vmem:[%s0 + $0x270] sm:$0xff]
  %v94 = vld [vmem:[%s0 + $0x278] sm:$0xff]
  %v95 = vld [vmem:[%s0 + $0x280] sm:$0xff]
  %v96 = vld [vmem:[%s0 + $0x288] sm:$0xff]
  %v97 = vld [vmem:[%s0 + $0x290] sm:$0xff]
  %v98 = vld [vmem:[%s0 + $0x298] sm:$0xff]
  %v99 = vld [vmem:[%s0 + $0x2a0] sm:$0xff]
  %v100 = vld [vmem:[%s0 + $0x2a8] sm:$0xff]
  %v101 = vld [vmem:[%s0 + $0x2b0] sm:$0xff]
  %v102 = vld [vmem:[%s0 + $0x2b8] sm:$0xff]
  %v103 = vld [vmem:[%s0 + $0x2c0] sm:$0xff]
  %v104 = vld [vmem:[%s0 + $0x2c8] sm:$0xff]
  %v105 = vld [vmem:[%s0 + $0x2d0] sm:$0xff]
  %v106 = vld [vmem:[%s0 + $0x2d8] sm:$0xff]
  %v107 = vld [vmem:[%s0 + $0x2e0] sm:$0xff]
  %v108 = vld [vmem:[%s0 + $0x2e8] sm:$0xff]
  %v109 = vld [vmem:[%s0 + $0x2f0] sm:$0xff]
  %v110 = vld [vmem:[%s0 + $0x2f8] sm:$0xff]
  %v111 = vld [vmem:[%s0 + $0x300] sm:$0xff]
  %v112 = vld [vmem:[%s0 + $0x308] sm:$0xff]
  %v113 = vld [vmem:[%s0 + $0x310] sm:$0xff]
  %v114 = vld [vmem:[%s0 + $0x318] sm:$0xff]
  %v115 = vld [vmem:[%s0 + $0x320] sm:$0xff]
  %v116 = vld [vmem:[%s0 + $0x328] sm:$0xff]
  %v117 = vld [vmem:[%s0 + $0x330] sm:$0xff]
  %v118 = vld [vmem:[%s0 + $0x338] sm:$0xff]
  %v119 = vld [vmem:[%s0 + $0x340] sm:$0xff]
  %v120 = vld [vmem:[%s0 + $0x348] sm:$0xff]
  %v121 = vld [vmem:[%s0 + $0x350] sm:$0xff]
  %v122 = vld [vmem:[%s0 + $0x358] sm:$0xff]
  %v123 = vld [vmem:[%s0 + $0x360] sm:$0xff]
  %v124 = vld [vmem:[%s0 + $0x368] sm:$0xff]
  %v125 = vld [vmem:[%s0 + $0x370] sm:$0xff]
  %v126 = vld [vmem:[%s0 + $0x378] sm:$0xff]
  %v127 = vld [vmem:[%s0 + $0x380] sm:$0xff]
  %v128 = vld [vmem:[%s0 + $0x388] sm:$0xff]
  %v129 = vld [vmem:[%s0 + $0x390] sm:$0xff]
  %v130 = vld [vmem:[%s0 + $0x398] sm:$0xff]
  %v131 = vld [vmem:[%s0 + $0x3a0] sm:$0xff]
  %v132 = vld [vmem:[%s0 + $0x3a8] sm:$0xff]
  %v133 = vld [vmem:[%s0 + $0x3b0] sm:$0xff]
  %v134 = vld [vmem:[%s0 + $0x3b8] sm:$0xff]
  %v135 = vld [vmem:[%s0 + $0x3c0] sm:$0xff]
  %v136 = vld [vmem:[%s0 + $0x3c8] sm:$0xff]
  %v137 = vld [vmem:[%s0 + $0x3d0] sm:$0xff]
  %v138 = vld [vmem:[%s0 + $0x3d8] sm:$0xff]
  %v139 = vld [vmem:[%s0 + $0x3e0] sm:$0xff]
  %v140 = vld [vmem:[%s0 + $0x3e8] sm:$0xff]
  %v141 = vld [vmem:[%s0 + $0x3f0] sm:$0xff]
  %v142 = vld [vmem:[%s0 + $0x3f8] sm:$0xff]
  %v143 = vld [vmem:[%s0 + $0x400] sm:$0xff]
  %v144 = vld [vmem:[%s0 + $0x408] sm:$0xff]
  %v145 = vld [vmem:[%s0 + $0x410] sm:$0xff]
  %v146 = vld [vmem:[%s0 + $0x418] sm:$0xff]
  %v147 = vld [vmem:[%s0 + $0x420] sm:$0xff]
  %v148 = vld [vmem:[%s0 + $0x428] sm:$0xff]
  %v149 = vld [vmem:[%s0 + $0x430] sm:$0xff]
  %v150 = vld [vmem:[%s0 + $0x438] sm:$0xff]
  %v151 = vld [vmem:[%s0 + $0x440] sm:$0xff]
  %v152 = vld [vmem:[%s0 + $0x448] sm:$0xff]
  %v153 = vld [vmem:[%s0 + $0x450] sm:$0xff]
  %v154 = vld [vmem:[%s0 + $0x458] sm:$0xff]
  %v155 = vld [vmem:[%s0 + $0x460] sm:$0xff]
  %v156 = vld [vmem:[%s0 + $0x468] sm:$0xff]
  %v157 = vld [vmem:[%s0 + $0x470] sm:$0xff]
  %v158 = vld [vmem:[%s0 + $0x478] sm:$0xff]
  %v159 = vld [vmem:[%s0 + $0x480] sm:$0xff]
  %v160 = vld [vmem:[%s0 + $0x488] sm:$0xff]
  %v161 = vld [vmem:[%s0 + $0x490] sm:$0xff]
  %v162 = vld [vmem:[%s0 + $0x498] sm:$0xff]
  %v163 = vld [vmem:[%s0 + $0x4a0] sm:$0xff]
  %v164 = vld [vmem:[%s0 + $0x4a8] sm:$0xff]
  %v165 = vld [vmem:[%s0 + $0x4b0] sm:$0xff]
  %v166 = vld [vmem:[%s0 + $0x4b8] sm:$0xff]
  %v167 = vld [vmem:[%s0 + $0x4c0] sm:$0xff]
  %v168 = vld [vmem:[%s0 + $0x4c8] sm:$0xff]
  %v169 = vld [vmem:[%s0 + $0x4d0] sm:$0xff]
  %v170 = vld [vmem:[%s0 + $0x4d8] sm:$0xff]
  %v171 = vld [vmem:[%s0 + $0x4e0] sm:$0xff]
  %v172 = vld [vmem:[%s0 + $0x4e8] sm:$0xff]
  %v173 = vld [vmem:[%s0 + $0x4f0] sm:$0xff]
  %v174 = vld [vmem:[%s0 + $0x4f8] sm:$0xff]
  %v175 = vld [vmem:[%s0 + $0x500] sm:$0xff]
  %v176 = vld [vmem:[%s0 + $0x508] sm:$0xff]
  %v177 = vld [vmem:[%s0 + $0x510] sm:$0xff]
  %v178 = vld [vmem:[%s0 + $0x518] sm:$0xff]
  %v179 = vld [vmem:[%s0 + $0x520] sm:$0xff]
  %v180 = vld [vmem:[%s0 + $0x528] sm:$0xff]
  %v181 = vld [vmem:[%s0 + $0x530] sm:$0xff]
  %v182 = vld [vmem:[%s0 + $0x538] sm:$0xff]
  %v183 = vld [vmem:[%s0 + $0x540] sm:$0xff]
  %v184 = vld [vmem:[%s0 + $0x548] sm:$0xff]
  %v185 = vld [vmem:[%s0 + $0x550] sm:$0xff]
  %v186 = vld [vmem:[%s0 + $0x558] sm:$0xff]
  %v187 = vld [vmem:[%s0 + $0x560] sm:$0xff]
  %v188 = vld [vmem:[%s0 + $0x568] sm:$0xff]
  %v189 = vld [vmem:[%s0 + $0x570] sm:$0xff]
  %v190 = vld [vmem:[%s0 + $0x578] sm:$0xff]
  %v191 = vld [vmem:[%s0 + $0x580] sm:$0xff]
  %v192 = vld [vmem:[%s0 + $0x588] sm:$0xff]
  %v193 = vld [vmem:[%s0 + $0x590] sm:$0xff]
  %v194 = vld [vmem:[%s0 + $0x598] sm:$0xff]
  %v195 = vld [vmem:[%s0 + $0x5a0] sm:$0xff]
  %v196 = vld [vmem:[%s0 + $0x5a8] sm:$0xff]
  %v197 = vld [vmem:[%s0 + $0x5b0] sm:$0xff]
  %v198 = vld [vmem:[%s0 + $0x5b8] sm:$0xff]
  %v199 = vld [vmem:[%s0 + $0x5c0] sm:$0xff]
  %v200 = vld [vmem:[%s0 + $0x5c8] sm:$0xff]
  %v201 = vld [vmem:[%s0 + $0x5d0] sm:$0xff]
  %v202 = vld [vmem:[%s0 + $0x5d8] sm:$0xff]
  %v203 = vld [vmem:[%s0 + $0x5e0] sm:$0xff]
  %v204 = vld [vmem:[%s0 + $0x5e8] sm:$0xff]
  %v205 = vld [vmem:[%s0 + $0x5f0] sm:$0xff]
  %v206 = vld [vmem:[%s0 + $0x5f8] sm:$0xff]
  %v207 = vld [vmem:[%s0 + $0x600] sm:$0xff]
  %v208 = vld [vmem:[%s0 + $0x608] sm:$0xff]
  %v209 = vld [vmem:[%s0 + $0x610] sm:$0xff]
  %v210 = vld [vmem:[%s0 + $0x618] sm:$0xff]
  %v211 = vld [vmem:[%s0 + $0x620] sm:$0xff]
  %v212 = vld [vmem:[%s0 + $0x628] sm:$0xff]
  %v213 = vld [vmem:[%s0 + $0x630] sm:$0xff]
  %v214 = vld [vmem:[%s0 + $0x638] sm:$0xff]
  %v215 = vld [vmem:[%s0 + $0x640] sm:$0xff]
  %v216 = vld [vmem:[%s0 + $0x648] sm:$0xff]
  %v217 = vld [vmem:[%s0 + $0x650] sm:$0xff]
  %v218 = vld [vmem:[%s0 + $0x658] sm:$0xff]
  %v219 = vld [vmem:[%s0 + $0x660] sm:$0xff]
  %v220 = vld [vmem:[%s0 + $0x668] sm:$0xff]
  %v221 = vld [vmem:[%s0 + $0x670] sm:$0xff]
  %v222 = vld [vmem:[%s0 + $0x678] sm:$0xff]
  %v223 = vld [vmem:[%s0 + $0x680] sm:$0xff]
  %v224 = vld [vmem:[%s0 + $0x688] sm:$0xff]
  %v225 = vld [vmem:[%s0 + $0x690] sm:$0xff]
  %v226 = vld [vmem:[%s0 + $0x698] sm:$0xff]
  %v227 = vld [vmem:[%s0 + $0x6a0] sm:$0xff]
  %v228 = vld [vmem:[%s0 + $0x6a8] sm:$0xff]
  %v229 = vld [vmem:[%s0 + $0x6b0] sm:$0xff]
  %v230 = vld [vmem:[%s0 + $0x6b8] sm:$0xff]
  %v231 = vld [vmem:[%s0 + $0x6c0] sm:$0xff]
  %v232 = vld [vmem:[%s0 + $0x6c8] sm:$0xff]
  %v233 = vld [vmem:[%s0 + $0x6d0] sm:$0xff]
  %v234 = vld [vmem:[%s0 + $0x6d8] sm:$0xff]
  %v235 = vld [vmem:[%s0 + $0x6e0] sm:$0xff]
  %v236 = vld [vmem:[%s0 + $0x6e8] sm:$0xff]
  %v237 = vld [vmem:[%s0 + $0x6f0] sm:$0xff]
  %v238 = vld [vmem:[%s0 + $0x6f8] sm:$0xff]
  %v239 = vmax.f32 %v15, 0.0
  %v240 = vmax.f32 %v16, 0.0
  %v241 = vmax.f32 %v17, 0.0
  %v242 = vmax.f32 %v18, 0.0
  %v243 = vmax.f32 %v19, 0.0
  %v244 = vmax.f32 %v20, 0.0
  %v245 = vmax.f32 %v21, 0.0
  %v246 = vmax.f32 %v22, 0.0
  %v247 = vmax.f32 %v23, 0.0
  %v248 = vmax.f32 %v24, 0.0
  %v249 = vmax.f32 %v25, 0.0
  %v250 = vmax.f32 %v26, 0.0
  %v251 = vmax.f32 %v27, 0.0
  %v252 = vmax.f32 %v28, 0.0
  %v253 = vmax.f32 %v29, 0.0
  %v254 = vmax.f32 %v30, 0.0
  %v255 = vmax.f32 %v31, 0.0
  %v256 = vmax.f32 %v32, 0.0
  %v257 = vmax.f32 %v33, 0.0
  %v258 = vmax.f32 %v34, 0.0
  %v259 = vmax.f32 %v35, 0.0
  %v260 = vmax.f32 %v36, 0.0
  %v261 = vmax.f32 %v37, 0.0
  %v262 = vmax.f32 %v38, 0.0
  %v263 = vmax.f32 %v39, 0.0
  %v264 = vmax.f32 %v40, 0.0
  %v265 = vmax.f32 %v41, 0.0
  %v266 = vmax.f32 %v42, 0.0
  %v267 = vmax.f32 %v43, 0.0
  %v268 = vmax.f32 %v44, 0.0
  %v269 = vmax.f32 %v45, 0.0
  %v270 = vmax.f32 %v46, 0.0
  %v271 = vmax.f32 %v47, 0.0
  %v272 = vmax.f32 %v48, 0.0
  %v273 = vmax.f32 %v49, 0.0
  %v274 = vmax.f32 %v50, 0.0
  %v275 = vmax.f32 %v51, 0.0
  %v276 = vmax.f32 %v52, 0.0
  %v277 = vmax.f32 %v53, 0.0
  %v278 = vmax.f32 %v54, 0.0
  %v279 = vmax.f32 %v55, 0.0
  %v280 = vmax.f32 %v56, 0.0
  %v281 = vmax.f32 %v57, 0.0
  %v282 = vmax.f32 %v58, 0.0
  %v283 = vmax.f32 %v59, 0.0
  %v284 = vmax.f32 %v60, 0.0
  %v285 = vmax.f32 %v61, 0.0
  %v286 = vmax.f32 %v62, 0.0
  %v287 = vmax.f32 %v63, 0.0
  %v288 = vmax.f32 %v64, 0.0
  %v289 = vmax.f32 %v65, 0.0
  %v290 = vmax.f32 %v66, 0.0
  %v291 = vmax.f32 %v67, 0.0
  %v292 = vmax.f32 %v68, 0.0
  %v293 = vmax.f32 %v69, 0.0
  %v294 = vmax.f32 %v70, 0.0
  %v295 = vmax.f32 %v71, 0.0
  %v296 = vmax.f32 %v72, 0.0
  %v297 = vmax.f32 %v73, 0.0
  %v298 = vmax.f32 %v74, 0.0
  %v299 = vmax.f32 %v75, 0.0
  %v300 = vmax.f32 %v76, 0.0
  %v301 = vmax.f32 %v77, 0.0
  %v302 = vmax.f32 %v78, 0.0
  %v303 = vmax.f32 %v79, 0.0
  %v304 = vmax.f32 %v80, 0.0
  %v305 = vmax.f32 %v81, 0.0
  %v306 = vmax.f32 %v82, 0.0
  %v307 = vmax.f32 %v83, 0.0
  %v308 = vmax.f32 %v84, 0.0
  %v309 = vmax.f32 %v85, 0.0
  %v310 = vmax.f32 %v86, 0.0
  %v311 = vmax.f32 %v87, 0.0
  %v312 = vmax.f32 %v88, 0.0
  %v313 = vmax.f32 %v89, 0.0
  %v314 = vmax.f32 %v90, 0.0
  %v315 = vmax.f32 %v91, 0.0
  %v316 = vmax.f32 %v92, 0.0
  %v317 = vmax.f32 %v93, 0.0
  %v318 = vmax.f32 %v94, 0.0
  %v319 = vmax.f32 %v95, 0.0
  %v320 = vmax.f32 %v96, 0.0
  %v321 = vmax.f32 %v97, 0.0
  %v322 = vmax.f32 %v98, 0.0
  %v323 = vmax.f32 %v99, 0.0
  %v324 = vmax.f32 %v100, 0.0
  %v325 = vmax.f32 %v101, 0.0
  %v326 = vmax.f32 %v102, 0.0
  %v327 = vmax.f32 %v103, 0.0
  %v328 = vmax.f32 %v104, 0.0
  %v329 = vmax.f32 %v105, 0.0
  %v330 = vmax.f32 %v106, 0.0
  %v331 = vmax.f32 %v107, 0.0
  %v332 = vmax.f32 %v108, 0.0
  %v333 = vmax.f32 %v109, 0.0
  %v334 = vmax.f32 %v110, 0.0
  %v335 = vmax.f32 %v111, 0.0
  %v336 = vmax.f32 %v112, 0.0
  %v337 = vmax.f32 %v113, 0.0
  %v338 = vmax.f32 %v114, 0.0
  %v339 = vmax.f32 %v115, 0.0
  %v340 = vmax.f32 %v116, 0.0
  %v341 = vmax.f32 %v117, 0.0
  %v342 = vmax.f32 %v118, 0.0
  %v343 = vmax.f32 %v119, 0.0
  %v344 = vmax.f32 %v120, 0.0
  %v345 = vmax.f32 %v121, 0.0
  %v346 = vmax.f32 %v122, 0.0
  %v347 = vmax.f32 %v123, 0.0
  %v348 = vmax.f32 %v124, 0.0
  %v349 = vmax.f32 %v125, 0.0
  %v350 = vmax.f32 %v126, 0.0
  %v351 = vmax.f32 %v127, 0.0
  %v352 = vmax.f32 %v128, 0.0
  %v353 = vmax.f32 %v129, 0.0
  %v354 = vmax.f32 %v130, 0.0
  %v355 = vmax.f32 %v131, 0.0
  %v356 = vmax.f32 %v132, 0.0
  %v357 = vmax.f32 %v133, 0.0
  %v358 = vmax.f32 %v134, 0.0
  %v359 = vmax.f32 %v135, 0.0
  %v360 = vmax.f32 %v136, 0.0
  %v361 = vmax.f32 %v137, 0.0
  %v362 = vmax.f32 %v138, 0.0
  %v363 = vmax.f32 %v139, 0.0
  %v364 = vmax.f32 %v140, 0.0
  %v365 = vmax.f32 %v141, 0.0
  %v366 = vmax.f32 %v142, 0.0
  %v367 = vmax.f32 %v143, 0.0
  %v368 = vmax.f32 %v144, 0.0
  %v369 = vmax.f32 %v145, 0.0
  %v370 = vmax.f32 %v146, 0.0
  %v371 = vmax.f32 %v147, 0.0
  %v372 = vmax.f32 %v148, 0.0
  %v373 = vmax.f32 %v149, 0.0
  %v374 = vmax.f32 %v150, 0.0
  %v375 = vmax.f32 %v151, 0.0
  %v376 = vmax.f32 %v152, 0.0
  %v377 = vmax.f32 %v153, 0.0
  %v378 = vmax.f32 %v154, 0.0
  %v379 = vmax.f32 %v155, 0.0
  %v380 = vmax.f32 %v156, 0.0
  %v381 = vmax.f32 %v157, 0.0
  %v382 = vmax.f32 %v158, 0.0
  %v383 = vmax.f32 %v159, 0.0
  %v384 = vmax.f32 %v160, 0.0
  %v385 = vmax.f32 %v161, 0.0
  %v386 = vmax.f32 %v162, 0.0
  %v387 = vmax.f32 %v163, 0.0
  %v388 = vmax.f32 %v164, 0.0
  %v389 = vmax.f32 %v165, 0.0
  %v390 = vmax.f32 %v166, 0.0
  %v391 = vmax.f32 %v167, 0.0
  %v392 = vmax.f32 %v168, 0.0
  %v393 = vmax.f32 %v169, 0.0
  %v394 = vmax.f32 %v170, 0.0
  %v395 = vmax.f32 %v171, 0.0
  %v396 = vmax.f32 %v172, 0.0
  %v397 = vmax.f32 %v173, 0.0
  %v398 = vmax.f32 %v174, 0.0
  %v399 = vmax.f32 %v175, 0.0
  %v400 = vmax.f32 %v176, 0.0
  %v401 = vmax.f32 %v177, 0.0
  %v402 = vmax.f32 %v178, 0.0
  %v403 = vmax.f32 %v179, 0.0
  %v404 = vmax.f32 %v180, 0.0
  %v405 = vmax.f32 %v181, 0.0
  %v406 = vmax.f32 %v182, 0.0
  %v407 = vmax.f32 %v183, 0.0
  %v408 = vmax.f32 %v184, 0.0
  %v409 = vmax.f32 %v185, 0.0
  %v410 = vmax.f32 %v186, 0.0
  %v411 = vmax.f32 %v187, 0.0
  %v412 = vmax.f32 %v188, 0.0
  %v413 = vmax.f32 %v189, 0.0
  %v414 = vmax.f32 %v190, 0.0
  %v415 = vmax.f32 %v191, 0.0
  %v416 = vmax.f32 %v192, 0.0
  %v417 = vmax.f32 %v193, 0.0
  %v418 = vmax.f32 %v194, 0.0
  %v419 = vmax.f32 %v195, 0.0
  %v420 = vmax.f32 %v196, 0.0
  %v421 = vmax.f32 %v197, 0.0
  %v422 = vmax.f32 %v198, 0.0
  %v423 = vmax.f32 %v199, 0.0
  %v424 = vmax.f32 %v200, 0.0
  %v425 = vmax.f32 %v201, 0.0
  %v426 = vmax.f32 %v202, 0.0
  %v427 = vmax.f32 %v203, 0.0
  %v428 = vmax.f32 %v204, 0.0
  %v429 = vmax.f32 %v205, 0.0
  %v430 = vmax.f32 %v206, 0.0
  %v431 = vmax.f32 %v207, 0.0
  %v432 = vmax.f32 %v208, 0.0
  %v433 = vmax.f32 %v209, 0.0
  %v434 = vmax.f32 %v210, 0.0
  %v435 = vmax.f32 %v211, 0.0
  %v436 = vmax.f32 %v212, 0.0
  %v437 = vmax.f32 %v213, 0.0
  %v438 = vmax.f32 %v214, 0.0
  %v439 = vmax.f32 %v215, 0.0
  %v440 = vmax.f32 %v216, 0.0
  %v441 = vmax.f32 %v217, 0.0
  %v442 = vmax.f32 %v218, 0.0
  %v443 = vmax.f32 %v219, 0.0
  %v444 = vmax.f32 %v220, 0.0
  %v445 = vmax.f32 %v221, 0.0
  %v446 = vmax.f32 %v222, 0.0
  %v447 = vmax.f32 %v223, 0.0
  %v448 = vmax.f32 %v224, 0.0
  %v449 = vmax.f32 %v225, 0.0
  %v450 = vmax.f32 %v226, 0.0
  %v451 = vmax.f32 %v227, 0.0
  %v452 = vmax.f32 %v228, 0.0
  %v453 = vmax.f32 %v229, 0.0
  %v454 = vmax.f32 %v230, 0.0
  %v455 = vmax.f32 %v231, 0.0
  %v456 = vmax.f32 %v232, 0.0
  %v457 = vmax.f32 %v233, 0.0
  %v458 = vmax.f32 %v234, 0.0
  %v459 = vmax.f32 %v235, 0.0
  %v460 = vmax.f32 %v236, 0.0
  %v461 = vmax.f32 %v237, 0.0
  %v462 = vmax.f32 %v238, 0.0
  %v463 = vpack.c.bf16 %v240, %v239
  %v464 = vpack.c.bf16 %v242, %v241
  %v465 = vpack.c.bf16 %v244, %v243
  %v466 = vpack.c.bf16 %v246, %v245
  %v467 = vpack.c.bf16 %v248, %v247
  %v468 = vpack.c.bf16 %v250, %v249
  %v469 = vpack.c.bf16 %v252, %v251
  %v470 = vpack.c.bf16 %v254, %v253
  %v471 = vpack.c.bf16 %v256, %v255
  %v472 = vpack.c.bf16 %v258, %v257
  %v473 = vpack.c.bf16 %v260, %v259
  %v474 = vpack.c.bf16 %v262, %v261
  %v475 = vpack.c.bf16 %v264, %v263
  %v476 = vpack.c.bf16 %v266, %v265
  %v477 = vpack.c.bf16 %v268, %v267
  %v478 = vpack.c.bf16 %v270, %v269
  %v479 = vpack.c.bf16 %v272, %v271
  %v480 = vpack.c.bf16 %v274, %v273
  %v481 = vpack.c.bf16 %v276, %v275
  %v482 = vpack.c.bf16 %v278, %v277
  %v483 = vpack.c.bf16 %v280, %v279
  %v484 = vpack.c.bf16 %v282, %v281
  %v485 = vpack.c.bf16 %v284, %v283
  %v486 = vpack.c.bf16 %v286, %v285
  %v487 = vpack.c.bf16 %v288, %v287
  %v488 = vpack.c.bf16 %v290, %v289
  %v489 = vpack.c.bf16 %v292, %v291
  %v490 = vpack.c.bf16 %v294, %v293
  %v491 = vpack.c.bf16 %v296, %v295
  %v492 = vpack.c.bf16 %v298, %v297
  %v493 = vpack.c.bf16 %v300, %v299
  %v494 = vpack.c.bf16 %v302, %v301
  %v495 = vpack.c.bf16 %v304, %v303
  %v496 = vpack.c.bf16 %v306, %v305
  %v497 = vpack.c.bf16 %v308, %v307
  %v498 = vpack.c.bf16 %v310, %v309
  %v499 = vpack.c.bf16 %v312, %v311
  %v500 = vpack.c.bf16 %v314, %v313
  %v501 = vpack.c.bf16 %v316, %v315
  %v502 = vpack.c.bf16 %v318, %v317
  %v503 = vpack.c.bf16 %v320, %v319
  %v504 = vpack.c.bf16 %v322, %v321
  %v505 = vpack.c.bf16 %v324, %v323
  %v506 = vpack.c.bf16 %v326, %v325
  %v507 = vpack.c.bf16 %v328, %v327
  %v508 = vpack.c.bf16 %v330, %v329
  %v509 = vpack.c.bf16 %v332, %v331
  %v510 = vpack.c.bf16 %v334, %v333
  %v511 = vpack.c.bf16 %v336, %v335
  %v512 = vpack.c.bf16 %v338, %v337
  %v513 = vpack.c.bf16 %v340, %v339
  %v514 = vpack.c.bf16 %v342, %v341
  %v515 = vpack.c.bf16 %v344, %v343
  %v516 = vpack.c.bf16 %v346, %v345
  %v517 = vpack.c.bf16 %v348, %v347
  %v518 = vpack.c.bf16 %v350, %v349
  %v519 = vpack.c.bf16 %v352, %v351
  %v520 = vpack.c.bf16 %v354, %v353
  %v521 = vpack.c.bf16 %v356, %v355
  %v522 = vpack.c.bf16 %v358, %v357
  %v523 = vpack.c.bf16 %v360, %v359
  %v524 = vpack.c.bf16 %v362, %v361
  %v525 = vpack.c.bf16 %v364, %v363
  %v526 = vpack.c.bf16 %v366, %v365
  %v527 = vpack.c.bf16 %v368, %v367
  %v528 = vpack.c.bf16 %v370, %v369
  %v529 = vpack.c.bf16 %v372, %v371
  %v530 = vpack.c.bf16 %v374, %v373
  %v531 = vpack.c.bf16 %v376, %v375
  %v532 = vpack.c.bf16 %v378, %v377
  %v533 = vpack.c.bf16 %v380, %v379
  %v534 = vpack.c.bf16 %v382, %v381
  %v535 = vpack.c.bf16 %v384, %v383
  %v536 = vpack.c.bf16 %v386, %v385
  %v537 = vpack.c.bf16 %v388, %v387
  %v538 = vpack.c.bf16 %v390, %v389
  %v539 = vpack.c.bf16 %v392, %v391
  %v540 = vpack.c.bf16 %v394, %v393
  %v541 = vpack.c.bf16 %v396, %v395
  %v542 = vpack.c.bf16 %v398, %v397
  %v543 = vpack.c.bf16 %v400, %v399
  %v544 = vpack.c.bf16 %v402, %v401
  %v545 = vpack.c.bf16 %v404, %v403
  %v546 = vpack.c.bf16 %v406, %v405
  %v547 = vpack.c.bf16 %v408, %v407
  %v548 = vpack.c.bf16 %v410, %v409
  %v549 = vpack.c.bf16 %v412, %v411
  %v550 = vpack.c.bf16 %v414, %v413
  %v551 = vpack.c.bf16 %v416, %v415
  %v552 = vpack.c.bf16 %v418, %v417
  %v553 = vpack.c.bf16 %v420, %v419
  %v554 = vpack.c.bf16 %v422, %v421
  %v555 = vpack.c.bf16 %v424, %v423
  %v556 = vpack.c.bf16 %v426, %v425
  %v557 = vpack.c.bf16 %v428, %v427
  %v558 = vpack.c.bf16 %v430, %v429
  %v559 = vpack.c.bf16 %v432, %v431
  %v560 = vpack.c.bf16 %v434, %v433
  %v561 = vpack.c.bf16 %v436, %v435
  %v562 = vpack.c.bf16 %v438, %v437
  %v563 = vpack.c.bf16 %v440, %v439
  %v564 = vpack.c.bf16 %v442, %v441
  %v565 = vpack.c.bf16 %v444, %v443
  %v566 = vpack.c.bf16 %v446, %v445
  %v567 = vpack.c.bf16 %v448, %v447
  %v568 = vpack.c.bf16 %v450, %v449
  %v569 = vpack.c.bf16 %v452, %v451
  %v570 = vpack.c.bf16 %v454, %v453
  %v571 = vpack.c.bf16 %v456, %v455
  %v572 = vpack.c.bf16 %v458, %v457
  %v573 = vpack.c.bf16 %v460, %v459
  %v574 = vpack.c.bf16 %v462, %v461
  %v575 = vld [vmem:[%s1] sm:$0xff]
  %v576 = vld [vmem:[%s1 + $0x8] sm:$0xff]
  %v577 = vld [vmem:[%s1 + $0x10] sm:$0xff]
  %v578 = vld [vmem:[%s1 + $0x18] sm:$0xff]
  %v579 = vld [vmem:[%s1 + $0x20] sm:$0xff]
  %v580 = vld [vmem:[%s1 + $0x28] sm:$0xff]
  %v581 = vld [vmem:[%s1 + $0x30] sm:$0xff]
  %v582 = vld [vmem:[%s1 + $0x38] sm:$0xff]
  %v583 = vld [vmem:[%s1 + $0x40] sm:$0xff]
  %v584 = vld [vmem:[%s1 + $0x48] sm:$0xff]
  %v585 = vld [vmem:[%s1 + $0x50] sm:$0xff]
  %v586 = vld [vmem:[%s1 + $0x58] sm:$0xff]
  %v587 = vld [vmem:[%s1 + $0x60] sm:$0xff]
  %v588 = vld [vmem:[%s1 + $0x68] sm:$0xff]
  %v589 = vld [vmem:[%s1 + $0x70] sm:$0xff]
  %v590 = vld [vmem:[%s1 + $0x78] sm:$0xff]
  %v591 = vld [vmem:[%s1 + $0x80] sm:$0xff]
  %v592 = vld [vmem:[%s1 + $0x88] sm:$0xff]
  %v593 = vld [vmem:[%s1 + $0x90] sm:$0xff]
  %v594 = vld [vmem:[%s1 + $0x98] sm:$0xff]
  %v595 = vld [vmem:[%s1 + $0xa0] sm:$0xff]
  %v596 = vld [vmem:[%s1 + $0xa8] sm:$0xff]
  %v597 = vld [vmem:[%s1 + $0xb0] sm:$0xff]
  %v598 = vld [vmem:[%s1 + $0xb8] sm:$0xff]
  %v599 = vld [vmem:[%s1 + $0xc0] sm:$0xff]
  %v600 = vld [vmem:[%s1 + $0xc8] sm:$0xff]
  %v601 = vld [vmem:[%s1 + $0xd0] sm:$0xff]
  %v602 = vld [vmem:[%s1 + $0xd8] sm:$0xff]
  %v603 = vld [vmem:[%s1 + $0xe0] sm:$0xff]
  %v604 = vld [vmem:[%s1 + $0xe8] sm:$0xff]
  %v605 = vld [vmem:[%s1 + $0xf0] sm:$0xff]
  %v606 = vld [vmem:[%s1 + $0xf8] sm:$0xff]
  %v607 = vld [vmem:[%s1 + $0x100] sm:$0xff]
  %v608 = vld [vmem:[%s1 + $0x108] sm:$0xff]
  %v609 = vld [vmem:[%s1 + $0x110] sm:$0xff]
  %v610 = vld [vmem:[%s1 + $0x118] sm:$0xff]
  %v611 = vld [vmem:[%s1 + $0x120] sm:$0xff]
  %v612 = vld [vmem:[%s1 + $0x128] sm:$0xff]
  %v613 = vld [vmem:[%s1 + $0x130] sm:$0xff]
  %v614 = vld [vmem:[%s1 + $0x138] sm:$0xff]
  %v615 = vld [vmem:[%s1 + $0x140] sm:$0xff]
  %v616 = vld [vmem:[%s1 + $0x148] sm:$0xff]
  %v617 = vld [vmem:[%s1 + $0x150] sm:$0xff]
  %v618 = vld [vmem:[%s1 + $0x158] sm:$0xff]
  %v619 = vld [vmem:[%s1 + $0x160] sm:$0xff]
  %v620 = vld [vmem:[%s1 + $0x168] sm:$0xff]
  %v621 = vld [vmem:[%s1 + $0x170] sm:$0xff]
  %v622 = vld [vmem:[%s1 + $0x178] sm:$0xff]
  %v623 = vld [vmem:[%s1 + $0x180] sm:$0xff]
  %v624 = vld [vmem:[%s1 + $0x188] sm:$0xff]
  %v625 = vld [vmem:[%s1 + $0x190] sm:$0xff]
  %v626 = vld [vmem:[%s1 + $0x198] sm:$0xff]
  %v627 = vld [vmem:[%s1 + $0x1a0] sm:$0xff]
  %v628 = vld [vmem:[%s1 + $0x1a8] sm:$0xff]
  %v629 = vld [vmem:[%s1 + $0x1b0] sm:$0xff]
  %v630 = vld [vmem:[%s1 + $0x1b8] sm:$0xff]
  %v631 = vld [vmem:[%s1 + $0x1c0] sm:$0xff]
  %v632 = vld [vmem:[%s1 + $0x1c8] sm:$0xff]
  %v633 = vld [vmem:[%s1 + $0x1d0] sm:$0xff]
  %v634 = vld [vmem:[%s1 + $0x1d8] sm:$0xff]
  %v635 = vld [vmem:[%s1 + $0x1e0] sm:$0xff]
  %v636 = vld [vmem:[%s1 + $0x1e8] sm:$0xff]
  %v637 = vld [vmem:[%s1 + $0x1f0] sm:$0xff]
  %v638 = vld [vmem:[%s1 + $0x1f8] sm:$0xff]
  %v639 = vld [vmem:[%s1 + $0x200] sm:$0xff]
  %v640 = vld [vmem:[%s1 + $0x208] sm:$0xff]
  %v641 = vld [vmem:[%s1 + $0x210] sm:$0xff]
  %v642 = vld [vmem:[%s1 + $0x218] sm:$0xff]
  %v643 = vld [vmem:[%s1 + $0x220] sm:$0xff]
  %v644 = vld [vmem:[%s1 + $0x228] sm:$0xff]
  %v645 = vld [vmem:[%s1 + $0x230] sm:$0xff]
  %v646 = vld [vmem:[%s1 + $0x238] sm:$0xff]
  %v647 = vld [vmem:[%s1 + $0x240] sm:$0xff]
  %v648 = vld [vmem:[%s1 + $0x248] sm:$0xff]
  %v649 = vld [vmem:[%s1 + $0x250] sm:$0xff]
  %v650 = vld [vmem:[%s1 + $0x258] sm:$0xff]
  %v651 = vld [vmem:[%s1 + $0x260] sm:$0xff]
  %v652 = vld [vmem:[%s1 + $0x268] sm:$0xff]
  %v653 = vld [vmem:[%s1 + $0x270] sm:$0xff]
  %v654 = vld [vmem:[%s1 + $0x278] sm:$0xff]
  %v655 = vld [vmem:[%s1 + $0x280] sm:$0xff]
  %v656 = vld [vmem:[%s1 + $0x288] sm:$0xff]
  %v657 = vld [vmem:[%s1 + $0x290] sm:$0xff]
  %v658 = vld [vmem:[%s1 + $0x298] sm:$0xff]
  %v659 = vld [vmem:[%s1 + $0x2a0] sm:$0xff]
  %v660 = vld [vmem:[%s1 + $0x2a8] sm:$0xff]
  %v661 = vld [vmem:[%s1 + $0x2b0] sm:$0xff]
  %v662 = vld [vmem:[%s1 + $0x2b8] sm:$0xff]
  %v663 = vld [vmem:[%s1 + $0x2c0] sm:$0xff]
  %v664 = vld [vmem:[%s1 + $0x2c8] sm:$0xff]
  %v665 = vld [vmem:[%s1 + $0x2d0] sm:$0xff]
  %v666 = vld [vmem:[%s1 + $0x2d8] sm:$0xff]
  %v667 = vld [vmem:[%s1 + $0x2e0] sm:$0xff]
  %v668 = vld [vmem:[%s1 + $0x2e8] sm:$0xff]
  %v669 = vld [vmem:[%s1 + $0x2f0] sm:$0xff]
  %v670 = vld [vmem:[%s1 + $0x2f8] sm:$0xff]
  %v671 = vld [vmem:[%s1 + $0x300] sm:$0xff]
  %v672 = vld [vmem:[%s1 + $0x308] sm:$0xff]
  %v673 = vld [vmem:[%s1 + $0x310] sm:$0xff]
  %v674 = vld [vmem:[%s1 + $0x318] sm:$0xff]
  %v675 = vld [vmem:[%s1 + $0x320] sm:$0xff]
  %v676 = vld [vmem:[%s1 + $0x328] sm:$0xff]
  %v677 = vld [vmem:[%s1 + $0x330] sm:$0xff]
  %v678 = vld [vmem:[%s1 + $0x338] sm:$0xff]
  %v679 = vld [vmem:[%s1 + $0x340] sm:$0xff]
  %v680 = vld [vmem:[%s1 + $0x348] sm:$0xff]
  %v681 = vld [vmem:[%s1 + $0x350] sm:$0xff]
  %v682 = vld [vmem:[%s1 + $0x358] sm:$0xff]
  %v683 = vld [vmem:[%s1 + $0x360] sm:$0xff]
  %v684 = vld [vmem:[%s1 + $0x368] sm:$0xff]
  %v685 = vld [vmem:[%s1 + $0x370] sm:$0xff]
  %v686 = vld [vmem:[%s1 + $0x378] sm:$0xff]
  %v799 = vunpack.c.l.b16 %v575
  %v800 = vunpack.c.h.b16 %v575
  %v801 = vunpack.c.l.b16 %v576
  %v802 = vunpack.c.h.b16 %v576
  %v803 = vunpack.c.l.b16 %v577
  %v804 = vunpack.c.h.b16 %v577
  %v805 = vunpack.c.l.b16 %v578
  %v806 = vunpack.c.h.b16 %v578
  %v807 = vunpack.c.l.b16 %v579
  %v808 = vunpack.c.h.b16 %v579
  %v809 = vunpack.c.l.b16 %v580
  %v810 = vunpack.c.h.b16 %v580
  %v811 = vunpack.c.l.b16 %v581
  %v812 = vunpack.c.h.b16 %v581
  %v813 = vunpack.c.l.b16 %v582
  %v814 = vunpack.c.h.b16 %v582
  %v815 = vunpack.c.l.b16 %v583
  %v816 = vunpack.c.h.b16 %v583
  %v817 = vunpack.c.l.b16 %v584
  %v818 = vunpack.c.h.b16 %v584
  %v819 = vunpack.c.l.b16 %v585
  %v820 = vunpack.c.h.b16 %v585
  %v821 = vunpack.c.l.b16 %v586
  %v822 = vunpack.c.h.b16 %v586
  %v823 = vunpack.c.l.b16 %v587
  %v824 = vunpack.c.h.b16 %v587
  %v825 = vunpack.c.l.b16 %v588
  %v826 = vunpack.c.h.b16 %v588
  %v827 = vunpack.c.l.b16 %v589
  %v828 = vunpack.c.h.b16 %v589
  %v829 = vunpack.c.l.b16 %v590
  %v830 = vunpack.c.h.b16 %v590
  %v831 = vunpack.c.l.b16 %v591
  %v832 = vunpack.c.h.b16 %v591
  %v833 = vunpack.c.l.b16 %v592
  %v834 = vunpack.c.h.b16 %v592
  %v835 = vunpack.c.l.b16 %v593
  %v836 = vunpack.c.h.b16 %v593
  %v837 = vunpack.c.l.b16 %v594
  %v838 = vunpack.c.h.b16 %v594
  %v839 = vunpack.c.l.b16 %v595
  %v840 = vunpack.c.h.b16 %v595
  %v841 = vunpack.c.l.b16 %v596
  %v842 = vunpack.c.h.b16 %v596
  %v843 = vunpack.c.l.b16 %v597
  %v844 = vunpack.c.h.b16 %v597
  %v845 = vunpack.c.l.b16 %v598
  %v846 = vunpack.c.h.b16 %v598
  %v847 = vunpack.c.l.b16 %v599
  %v848 = vunpack.c.h.b16 %v599
  %v849 = vunpack.c.l.b16 %v600
  %v850 = vunpack.c.h.b16 %v600
  %v851 = vunpack.c.l.b16 %v601
  %v852 = vunpack.c.h.b16 %v601
  %v853 = vunpack.c.l.b16 %v602
  %v854 = vunpack.c.h.b16 %v602
  %v855 = vunpack.c.l.b16 %v603
  %v856 = vunpack.c.h.b16 %v603
  %v857 = vunpack.c.l.b16 %v604
  %v858 = vunpack.c.h.b16 %v604
  %v859 = vunpack.c.l.b16 %v605
  %v860 = vunpack.c.h.b16 %v605
  %v861 = vunpack.c.l.b16 %v606
  %v862 = vunpack.c.h.b16 %v606
  %v863 = vunpack.c.l.b16 %v607
  %v864 = vunpack.c.h.b16 %v607
  %v865 = vunpack.c.l.b16 %v608
  %v866 = vunpack.c.h.b16 %v608
  %v867 = vunpack.c.l.b16 %v609
  %v868 = vunpack.c.h.b16 %v609
  %v869 = vunpack.c.l.b16 %v610
  %v870 = vunpack.c.h.b16 %v610
  %v871 = vunpack.c.l.b16 %v611
  %v872 = vunpack.c.h.b16 %v611
  %v873 = vunpack.c.l.b16 %v612
  %v874 = vunpack.c.h.b16 %v612
  %v875 = vunpack.c.l.b16 %v613
  %v876 = vunpack.c.h.b16 %v613
  %v877 = vunpack.c.l.b16 %v614
  %v878 = vunpack.c.h.b16 %v614
  %v879 = vunpack.c.l.b16 %v615
  %v880 = vunpack.c.h.b16 %v615
  %v881 = vunpack.c.l.b16 %v616
  %v882 = vunpack.c.h.b16 %v616
  %v883 = vunpack.c.l.b16 %v617
  %v884 = vunpack.c.h.b16 %v617
  %v885 = vunpack.c.l.b16 %v618
  %v886 = vunpack.c.h.b16 %v618
  %v887 = vunpack.c.l.b16 %v619
  %v888 = vunpack.c.h.b16 %v619
  %v889 = vunpack.c.l.b16 %v620
  %v890 = vunpack.c.h.b16 %v620
  %v891 = vunpack.c.l.b16 %v621
  %v892 = vunpack.c.h.b16 %v621
  %v893 = vunpack.c.l.b16 %v622
  %v894 = vunpack.c.h.b16 %v622
  %v895 = vunpack.c.l.b16 %v623
  %v896 = vunpack.c.h.b16 %v623
  %v897 = vunpack.c.l.b16 %v624
  %v898 = vunpack.c.h.b16 %v624
  %v899 = vunpack.c.l.b16 %v625
  %v900 = vunpack.c.h.b16 %v625
  %v901 = vunpack.c.l.b16 %v626
  %v902 = vunpack.c.h.b16 %v626
  %v903 = vunpack.c.l.b16 %v627
  %v904 = vunpack.c.h.b16 %v627
  %v905 = vunpack.c.l.b16 %v628
  %v906 = vunpack.c.h.b16 %v628
  %v907 = vunpack.c.l.b16 %v629
  %v908 = vunpack.c.h.b16 %v629
  %v909 = vunpack.c.l.b16 %v630
  %v910 = vunpack.c.h.b16 %v630
  %v911 = vunpack.c.l.b16 %v631
  %v912 = vunpack.c.h.b16 %v631
  %v913 = vunpack.c.l.b16 %v632
  %v914 = vunpack.c.h.b16 %v632
  %v915 = vunpack.c.l.b16 %v633
  %v916 = vunpack.c.h.b16 %v633
  %v917 = vunpack.c.l.b16 %v634
  %v918 = vunpack.c.h.b16 %v634
  %v919 = vunpack.c.l.b16 %v635
  %v920 = vunpack.c.h.b16 %v635
  %v921 = vunpack.c.l.b16 %v636
  %v922 = vunpack.c.h.b16 %v636
  %v923 = vunpack.c.l.b16 %v637
  %v924 = vunpack.c.h.b16 %v637
  %v925 = vunpack.c.l.b16 %v638
  %v926 = vunpack.c.h.b16 %v638
  %v927 = vunpack.c.l.b16 %v639
  %v928 = vunpack.c.h.b16 %v639
  %v929 = vunpack.c.l.b16 %v640
  %v930 = vunpack.c.h.b16 %v640
  %v931 = vunpack.c.l.b16 %v641
  %v932 = vunpack.c.h.b16 %v641
  %v933 = vunpack.c.l.b16 %v642
  %v934 = vunpack.c.h.b16 %v642
  %v935 = vunpack.c.l.b16 %v643
  %v936 = vunpack.c.h.b16 %v643
  %v937 = vunpack.c.l.b16 %v644
  %v938 = vunpack.c.h.b16 %v644
  %v939 = vunpack.c.l.b16 %v645
  %v940 = vunpack.c.h.b16 %v645
  %v941 = vunpack.c.l.b16 %v646
  %v942 = vunpack.c.h.b16 %v646
  %v943 = vunpack.c.l.b16 %v647
  %v944 = vunpack.c.h.b16 %v647
  %v945 = vunpack.c.l.b16 %v648
  %v946 = vunpack.c.h.b16 %v648
  %v947 = vunpack.c.l.b16 %v649
  %v948 = vunpack.c.h.b16 %v649
  %v949 = vunpack.c.l.b16 %v650
  %v950 = vunpack.c.h.b16 %v650
  %v951 = vunpack.c.l.b16 %v651
  %v952 = vunpack.c.h.b16 %v651
  %v953 = vunpack.c.l.b16 %v652
  %v954 = vunpack.c.h.b16 %v652
  %v955 = vunpack.c.l.b16 %v653
  %v956 = vunpack.c.h.b16 %v653
  %v957 = vunpack.c.l.b16 %v654
  %v958 = vunpack.c.h.b16 %v654
  %v959 = vunpack.c.l.b16 %v655
  %v960 = vunpack.c.h.b16 %v655
  %v961 = vunpack.c.l.b16 %v656
  %v962 = vunpack.c.h.b16 %v656
  %v963 = vunpack.c.l.b16 %v657
  %v964 = vunpack.c.h.b16 %v657
  %v965 = vunpack.c.l.b16 %v658
  %v966 = vunpack.c.h.b16 %v658
  %v967 = vunpack.c.l.b16 %v659
  %v968 = vunpack.c.h.b16 %v659
  %v969 = vunpack.c.l.b16 %v660
  %v970 = vunpack.c.h.b16 %v660
  %v971 = vunpack.c.l.b16 %v661
  %v972 = vunpack.c.h.b16 %v661
  %v973 = vunpack.c.l.b16 %v662
  %v974 = vunpack.c.h.b16 %v662
  %v975 = vunpack.c.l.b16 %v663
  %v976 = vunpack.c.h.b16 %v663
  %v977 = vunpack.c.l.b16 %v664
  %v978 = vunpack.c.h.b16 %v664
  %v979 = vunpack.c.l.b16 %v665
  %v980 = vunpack.c.h.b16 %v665
  %v981 = vunpack.c.l.b16 %v666
  %v982 = vunpack.c.h.b16 %v666
  %v983 = vunpack.c.l.b16 %v667
  %v984 = vunpack.c.h.b16 %v667
  %v985 = vunpack.c.l.b16 %v668
  %v986 = vunpack.c.h.b16 %v668
  %v987 = vunpack.c.l.b16 %v669
  %v988 = vunpack.c.h.b16 %v669
  %v989 = vunpack.c.l.b16 %v670
  %v990 = vunpack.c.h.b16 %v670
  %v991 = vunpack.c.l.b16 %v671
  %v992 = vunpack.c.h.b16 %v671
  %v993 = vunpack.c.l.b16 %v672
  %v994 = vunpack.c.h.b16 %v672
  %v995 = vunpack.c.l.b16 %v673
  %v996 = vunpack.c.h.b16 %v673
  %v997 = vunpack.c.l.b16 %v674
  %v998 = vunpack.c.h.b16 %v674
  %v999 = vunpack.c.l.b16 %v675
  %v1000 = vunpack.c.h.b16 %v675
  %v1001 = vunpack.c.l.b16 %v676
  %v1002 = vunpack.c.h.b16 %v676
  %v1003 = vunpack.c.l.b16 %v677
  %v1004 = vunpack.c.h.b16 %v677
  %v1005 = vunpack.c.l.b16 %v678
  %v1006 = vunpack.c.h.b16 %v678
  %v1007 = vunpack.c.l.b16 %v679
  %v1008 = vunpack.c.h.b16 %v679
  %v1009 = vunpack.c.l.b16 %v680
  %v1010 = vunpack.c.h.b16 %v680
  %v1011 = vunpack.c.l.b16 %v681
  %v1012 = vunpack.c.h.b16 %v681
  %v1013 = vunpack.c.l.b16 %v682
  %v1014 = vunpack.c.h.b16 %v682
  %v1015 = vunpack.c.l.b16 %v683
  %v1016 = vunpack.c.h.b16 %v683
  %v1017 = vunpack.c.l.b16 %v684
  %v1018 = vunpack.c.h.b16 %v684
  %v1019 = vunpack.c.l.b16 %v685
  %v1020 = vunpack.c.h.b16 %v685
  %v1021 = vunpack.c.l.b16 %v686
  %v1022 = vunpack.c.h.b16 %v686
  %v1023 = vpack.c.b16 %v813, %v799
  %v1024 = vpack.c.b16 %v814, %v800
  %v1025 = vpack.c.b16 %v815, %v801
  %v1026 = vpack.c.b16 %v816, %v802
  %v1027 = vpack.c.b16 %v817, %v803
  %v1028 = vpack.c.b16 %v818, %v804
  %v1029 = vpack.c.b16 %v819, %v805
  %v1030 = vpack.c.b16 %v820, %v806
  %v1031 = vpack.c.b16 %v821, %v807
  %v1032 = vpack.c.b16 %v822, %v808
  %v1033 = vpack.c.b16 %v823, %v809
  %v1034 = vpack.c.b16 %v824, %v810
  %v1035 = vpack.c.b16 %v825, %v811
  %v1036 = vpack.c.b16 %v826, %v812
  %v1037 = vpack.c.b16 %v841, %v827
  %v1038 = vpack.c.b16 %v842, %v828
  %v1039 = vpack.c.b16 %v843, %v829
  %v1040 = vpack.c.b16 %v844, %v830
  %v1041 = vpack.c.b16 %v845, %v831
  %v1042 = vpack.c.b16 %v846, %v832
  %v1043 = vpack.c.b16 %v847, %v833
  %v1044 = vpack.c.b16 %v848, %v834
  %v1045 = vpack.c.b16 %v849, %v835
  %v1046 = vpack.c.b16 %v850, %v836
  %v1047 = vpack.c.b16 %v851, %v837
  %v1048 = vpack.c.b16 %v852, %v838
  %v1049 = vpack.c.b16 %v853, %v839
  %v1050 = vpack.c.b16 %v854, %v840
  %v1051 = vpack.c.b16 %v869, %v855
  %v1052 = vpack.c.b16 %v870, %v856
  %v1053 = vpack.c.b16 %v871, %v857
  %v1054 = vpack.c.b16 %v872, %v858
  %v1055 = vpack.c.b16 %v873, %v859
  %v1056 = vpack.c.b16 %v874, %v860
  %v1057 = vpack.c.b16 %v875, %v861
  %v1058 = vpack.c.b16 %v876, %v862
  %v1059 = vpack.c.b16 %v877, %v863
  %v1060 = vpack.c.b16 %v878, %v864
  %v1061 = vpack.c.b16 %v879, %v865
  %v1062 = vpack.c.b16 %v880, %v866
  %v1063 = vpack.c.b16 %v881, %v867
  %v1064 = vpack.c.b16 %v882, %v868
  %v1065 = vpack.c.b16 %v897, %v883
  %v1066 = vpack.c.b16 %v898, %v884
  %v1067 = vpack.c.b16 %v899, %v885
  %v1068 = vpack.c.b16 %v900, %v886
  %v1069 = vpack.c.b16 %v901, %v887
  %v1070 = vpack.c.b16 %v902, %v888
  %v1071 = vpack.c.b16 %v903, %v889
  %v1072 = vpack.c.b16 %v904, %v890
  %v1073 = vpack.c.b16 %v905, %v891
  %v1074 = vpack.c.b16 %v906, %v892
  %v1075 = vpack.c.b16 %v907, %v893
  %v1076 = vpack.c.b16 %v908, %v894
  %v1077 = vpack.c.b16 %v909, %v895
  %v1078 = vpack.c.b16 %v910, %v896
  %v1079 = vpack.c.b16 %v925, %v911
  %v1080 = vpack.c.b16 %v926, %v912
  %v1081 = vpack.c.b16 %v927, %v913
  %v1082 = vpack.c.b16 %v928, %v914
  %v1083 = vpack.c.b16 %v929, %v915
  %v1084 = vpack.c.b16 %v930, %v916
  %v1085 = vpack.c.b16 %v931, %v917
  %v1086 = vpack.c.b16 %v932, %v918
  %v1087 = vpack.c.b16 %v933, %v919
  %v1088 = vpack.c.b16 %v934, %v920
  %v1089 = vpack.c.b16 %v935, %v921
  %v1090 = vpack.c.b16 %v936, %v922
  %v1091 = vpack.c.b16 %v937, %v923
  %v1092 = vpack.c.b16 %v938, %v924
  %v1093 = vpack.c.b16 %v953, %v939
  %v1094 = vpack.c.b16 %v954, %v940
  %v1095 = vpack.c.b16 %v955, %v941
  %v1096 = vpack.c.b16 %v956, %v942
  %v1097 = vpack.c.b16 %v957, %v943
  %v1098 = vpack.c.b16 %v958, %v944
  %v1099 = vpack.c.b16 %v959, %v945
  %v1100 = vpack.c.b16 %v960, %v946
  %v1101 = vpack.c.b16 %v961, %v947
  %v1102 = vpack.c.b16 %v962, %v948
  %v1103 = vpack.c.b16 %v963, %v949
  %v1104 = vpack.c.b16 %v964, %v950
  %v1105 = vpack.c.b16 %v965, %v951
  %v1106 = vpack.c.b16 %v966, %v952
  %v1107 = vpack.c.b16 %v981, %v967
  %v1108 = vpack.c.b16 %v982, %v968
  %v1109 = vpack.c.b16 %v983, %v969
  %v1110 = vpack.c.b16 %v984, %v970
  %v1111 = vpack.c.b16 %v985, %v971
  %v1112 = vpack.c.b16 %v986, %v972
  %v1113 = vpack.c.b16 %v987, %v973
  %v1114 = vpack.c.b16 %v988, %v974
  %v1115 = vpack.c.b16 %v989, %v975
  %v1116 = vpack.c.b16 %v990, %v976
  %v1117 = vpack.c.b16 %v991, %v977
  %v1118 = vpack.c.b16 %v992, %v978
  %v1119 = vpack.c.b16 %v993, %v979
  %v1120 = vpack.c.b16 %v994, %v980
  %v1121 = vpack.c.b16 %v1009, %v995
  %v1122 = vpack.c.b16 %v1010, %v996
  %v1123 = vpack.c.b16 %v1011, %v997
  %v1124 = vpack.c.b16 %v1012, %v998
  %v1125 = vpack.c.b16 %v1013, %v999
  %v1126 = vpack.c.b16 %v1014, %v1000
  %v1127 = vpack.c.b16 %v1015, %v1001
  %v1128 = vpack.c.b16 %v1016, %v1002
  %v1129 = vpack.c.b16 %v1017, %v1003
  %v1130 = vpack.c.b16 %v1018, %v1004
  %v1131 = vpack.c.b16 %v1019, %v1005
  %v1132 = vpack.c.b16 %v1020, %v1006
  %v1133 = vpack.c.b16 %v1021, %v1007
  %v1134 = vpack.c.b16 %v1022, %v1008
  %1247 = vmatprep.subr.bf16.mxu0 0
  %1248 = vmatpush1.bf16.msra.mxu0 %v470
  %1249 = vmatprep.subr.bf16.mxu0 0
  %1250 = vmatpush1.bf16.msra.mxu0 %v469
  %1251 = vmatprep.subr.bf16.mxu0 0
  %1252 = vmatpush1.bf16.msra.mxu0 %v468
  %1253 = vmatprep.subr.bf16.mxu0 0
  %1254 = vmatpush1.bf16.msra.mxu0 %v467
  %1255 = vmatprep.subr.bf16.mxu0 0
  %1256 = vmatpush1.bf16.msra.mxu0 %v466
  %1257 = vmatprep.subr.bf16.mxu0 0
  %1258 = vmatpush1.bf16.msra.mxu0 %v465
  %1259 = vmatprep.subr.bf16.mxu0 0
  %1260 = vmatpush1.bf16.msra.mxu0 %v464
  %1261 = vmatprep.subr.bf16.mxu0 0
  %1262 = vmatpush1.bf16.msra.mxu0 %v463
  %1263 = vmatprep.subr.bf16.mxu0 0
  %1264 = vmatpush2.bf16.msra.mxu0 %v478
  %1265 = vmatprep.subr.bf16.mxu0 0
  %1266 = vmatpush2.bf16.msra.mxu0 %v477
  %1267 = vmatprep.subr.bf16.mxu0 0
  %1268 = vmatpush2.bf16.msra.mxu0 %v476
  %1269 = vmatprep.subr.bf16.mxu0 0
  %1270 = vmatpush2.bf16.msra.mxu0 %v475
  %1271 = vmatprep.subr.bf16.mxu0 0
  %1272 = vmatpush2.bf16.msra.mxu0 %v474
  %1273 = vmatprep.subr.bf16.mxu0 0
  %1274 = vmatpush2.bf16.msra.mxu0 %v473
  %1275 = vmatprep.subr.bf16.mxu0 0
  %1276 = vmatpush2.bf16.msra.mxu0 %v472
  %1277 = vmatprep.subr.bf16.mxu0 0
  %1278 = vmatpush2.bf16.msra.mxu0 %v471
  %1279 = vmatprep.mubr.bf16.mxu0 %v1024
  %1280 = vmatmul.mubr.bf16.gmra.mxu0 %v1023
  %v1281 = vpop.f32.mrf.mxu0
  %v1282 = vadd.f32 0.0, %v1281
  %v1283 = vpop.f32.mrf.mxu0
  %v1284 = vpop.f32.mrf.mxu0
  %v1285 = vadd.f32 0.0, %v1284
  %v1286 = vpop.f32.mrf.mxu0
  %1287 = vmatprep.mubr.bf16.mxu0 %v1038
  %1288 = vmatmul.mubr.bf16.gmra.mxu0 %v1037
  %v1289 = vpop.f32.mrf.mxu0
  %v1290 = vadd.f32 0.0, %v1289
  %v1291 = vpop.f32.mrf.mxu0
  %v1292 = vpop.f32.mrf.mxu0
  %v1293 = vadd.f32 0.0, %v1292
  %v1294 = vpop.f32.mrf.mxu0
  %1295 = vmatprep.mubr.bf16.mxu0 %v1052
  %1296 = vmatmul.mubr.bf16.gmra.mxu0 %v1051
  %v1297 = vpop.f32.mrf.mxu0
  %v1298 = vadd.f32 0.0, %v1297
  %v1299 = vpop.f32.mrf.mxu0
  %v1300 = vpop.f32.mrf.mxu0
  %v1301 = vadd.f32 0.0, %v1300
  %v1302 = vpop.f32.mrf.mxu0
  %1303 = vmatprep.mubr.bf16.mxu0 %v1066
  %1304 = vmatmul.mubr.bf16.gmra.mxu0 %v1065
  %v1305 = vpop.f32.mrf.mxu0
  %v1306 = vadd.f32 0.0, %v1305
  %v1307 = vpop.f32.mrf.mxu0
  %v1308 = vpop.f32.mrf.mxu0
  %v1309 = vadd.f32 0.0, %v1308
  %v1310 = vpop.f32.mrf.mxu0
  %1311 = vmatprep.mubr.bf16.mxu0 %v1080
  %1312 = vmatmul.mubr.bf16.gmra.mxu0 %v1079
  %v1313 = vpop.f32.mrf.mxu0
  %v1314 = vadd.f32 0.0, %v1313
  %v1315 = vpop.f32.mrf.mxu0
  %v1316 = vpop.f32.mrf.mxu0
  %v1317 = vadd.f32 0.0, %v1316
  %v1318 = vpop.f32.mrf.mxu0
  %1319 = vmatprep.mubr.bf16.mxu0 %v1094
  %1320 = vmatmul.mubr.bf16.gmra.mxu0 %v1093
  %v1321 = vpop.f32.mrf.mxu0
  %v1322 = vadd.f32 0.0, %v1321
  %v1323 = vpop.f32.mrf.mxu0
  %v1324 = vpop.f32.mrf.mxu0
  %v1325 = vadd.f32 0.0, %v1324
  %v1326 = vpop.f32.mrf.mxu0
  %1327 = vmatprep.mubr.bf16.mxu0 %v1108
  %1328 = vmatmul.mubr.bf16.gmra.mxu0 %v1107
  %v1329 = vpop.f32.mrf.mxu0
  %v1330 = vadd.f32 0.0, %v1329
  %v1331 = vpop.f32.mrf.mxu0
  %v1332 = vpop.f32.mrf.mxu0
  %v1333 = vadd.f32 0.0, %v1332
  %v1334 = vpop.f32.mrf.mxu0
  %1335 = vmatprep.mubr.bf16.mxu0 %v1122
  %1336 = vmatmul.mubr.bf16.gmra.mxu0 %v1121
  %v1337 = vpop.f32.mrf.mxu0
  %v1338 = vadd.f32 0.0, %v1337
  %v1339 = vpop.f32.mrf.mxu0
  %v1340 = vpop.f32.mrf.mxu0
  %v1341 = vadd.f32 0.0, %v1340
  %v1342 = vpop.f32.mrf.mxu0
  %1343 = vdwg.mxu0
  %1344 = vmatprep.subr.bf16.mxu0 0
  %1345 = vmatpush1.bf16.msra.mxu0 %v486
  %1346 = vmatprep.subr.bf16.mxu0 0
  %1347 = vmatpush1.bf16.msra.mxu0 %v485
  %1348 = vmatprep.subr.bf16.mxu0 0
  %1349 = vmatpush1.bf16.msra.mxu0 %v484
  %1350 = vmatprep.subr.bf16.mxu0 0
  %1351 = vmatpush1.bf16.msra.mxu0 %v483
  %1352 = vmatprep.subr.bf16.mxu0 0
  %1353 = vmatpush1.bf16.msra.mxu0 %v482
  %1354 = vmatprep.subr.bf16.mxu0 0
  %1355 = vmatpush1.bf16.msra.mxu0 %v481
  %1356 = vmatprep.subr.bf16.mxu0 0
  %1357 = vmatpush1.bf16.msra.mxu0 %v480
  %1358 = vmatprep.subr.bf16.mxu0 0
  %1359 = vmatpush1.bf16.msra.mxu0 %v479
  %1360 = vmatprep.subr.bf16.mxu0 0
  %1361 = vmatpush2.bf16.msra.mxu0 %v494
  %1362 = vmatprep.subr.bf16.mxu0 0
  %1363 = vmatpush2.bf16.msra.mxu0 %v493
  %1364 = vmatprep.subr.bf16.mxu0 0
  %1365 = vmatpush2.bf16.msra.mxu0 %v492
  %1366 = vmatprep.subr.bf16.mxu0 0
  %1367 = vmatpush2.bf16.msra.mxu0 %v491
  %1368 = vmatprep.subr.bf16.mxu0 0
  %1369 = vmatpush2.bf16.msra.mxu0 %v490
  %1370 = vmatprep.subr.bf16.mxu0 0
  %1371 = vmatpush2.bf16.msra.mxu0 %v489
  %1372 = vmatprep.subr.bf16.mxu0 0
  %1373 = vmatpush2.bf16.msra.mxu0 %v488
  %1374 = vmatprep.subr.bf16.mxu0 0
  %1375 = vmatpush2.bf16.msra.mxu0 %v487
  %1376 = vmatprep.mubr.bf16.mxu0 %v1026
  %1377 = vmatmul.mubr.bf16.gmra.mxu0 %v1025
  %v1378 = vpop.f32.mrf.mxu0
  %v1379 = vadd.f32 %v1282, %v1378
  %v1380 = vpop.f32.mrf.mxu0
  %v1381 = vpop.f32.mrf.mxu0
  %v1382 = vadd.f32 %v1285, %v1381
  %v1383 = vpop.f32.mrf.mxu0
  %1384 = vmatprep.mubr.bf16.mxu0 %v1040
  %1385 = vmatmul.mubr.bf16.gmra.mxu0 %v1039
  %v1386 = vpop.f32.mrf.mxu0
  %v1387 = vadd.f32 %v1290, %v1386
  %v1388 = vpop.f32.mrf.mxu0
  %v1389 = vpop.f32.mrf.mxu0
  %v1390 = vadd.f32 %v1293, %v1389
  %v1391 = vpop.f32.mrf.mxu0
  %1392 = vmatprep.mubr.bf16.mxu0 %v1054
  %1393 = vmatmul.mubr.bf16.gmra.mxu0 %v1053
  %v1394 = vpop.f32.mrf.mxu0
  %v1395 = vadd.f32 %v1298, %v1394
  %v1396 = vpop.f32.mrf.mxu0
  %v1397 = vpop.f32.mrf.mxu0
  %v1398 = vadd.f32 %v1301, %v1397
  %v1399 = vpop.f32.mrf.mxu0
  %1400 = vmatprep.mubr.bf16.mxu0 %v1068
  %1401 = vmatmul.mubr.bf16.gmra.mxu0 %v1067
  %v1402 = vpop.f32.mrf.mxu0
  %v1403 = vadd.f32 %v1306, %v1402
  %v1404 = vpop.f32.mrf.mxu0
  %v1405 = vpop.f32.mrf.mxu0
  %v1406 = vadd.f32 %v1309, %v1405
  %v1407 = vpop.f32.mrf.mxu0
  %1408 = vmatprep.mubr.bf16.mxu0 %v1082
  %1409 = vmatmul.mubr.bf16.gmra.mxu0 %v1081
  %v1410 = vpop.f32.mrf.mxu0
  %v1411 = vadd.f32 %v1314, %v1410
  %v1412 = vpop.f32.mrf.mxu0
  %v1413 = vpop.f32.mrf.mxu0
  %v1414 = vadd.f32 %v1317, %v1413
  %v1415 = vpop.f32.mrf.mxu0
  %1416 = vmatprep.mubr.bf16.mxu0 %v1096
  %1417 = vmatmul.mubr.bf16.gmra.mxu0 %v1095
  %v1418 = vpop.f32.mrf.mxu0
  %v1419 = vadd.f32 %v1322, %v1418
  %v1420 = vpop.f32.mrf.mxu0
  %v1421 = vpop.f32.mrf.mxu0
  %v1422 = vadd.f32 %v1325, %v1421
  %v1423 = vpop.f32.mrf.mxu0
  %1424 = vmatprep.mubr.bf16.mxu0 %v1110
  %1425 = vmatmul.mubr.bf16.gmra.mxu0 %v1109
  %v1426 = vpop.f32.mrf.mxu0
  %v1427 = vadd.f32 %v1330, %v1426
  %v1428 = vpop.f32.mrf.mxu0
  %v1429 = vpop.f32.mrf.mxu0
  %v1430 = vadd.f32 %v1333, %v1429
  %v1431 = vpop.f32.mrf.mxu0
  %1432 = vmatprep.mubr.bf16.mxu0 %v1124
  %1433 = vmatmul.mubr.bf16.gmra.mxu0 %v1123
  %v1434 = vpop.f32.mrf.mxu0
  %v1435 = vadd.f32 %v1338, %v1434
  %v1436 = vpop.f32.mrf.mxu0
  %v1437 = vpop.f32.mrf.mxu0
  %v1438 = vadd.f32 %v1341, %v1437
  %v1439 = vpop.f32.mrf.mxu0
  %1440 = vdwg.mxu0
  %1441 = vmatprep.subr.bf16.mxu0 0
  %1442 = vmatpush1.bf16.msra.mxu0 %v502
  %1443 = vmatprep.subr.bf16.mxu0 0
  %1444 = vmatpush1.bf16.msra.mxu0 %v501
  %1445 = vmatprep.subr.bf16.mxu0 0
  %1446 = vmatpush1.bf16.msra.mxu0 %v500
  %1447 = vmatprep.subr.bf16.mxu0 0
  %1448 = vmatpush1.bf16.msra.mxu0 %v499
  %1449 = vmatprep.subr.bf16.mxu0 0
  %1450 = vmatpush1.bf16.msra.mxu0 %v498
  %1451 = vmatprep.subr.bf16.mxu0 0
  %1452 = vmatpush1.bf16.msra.mxu0 %v497
  %1453 = vmatprep.subr.bf16.mxu0 0
  %1454 = vmatpush1.bf16.msra.mxu0 %v496
  %1455 = vmatprep.subr.bf16.mxu0 0
  %1456 = vmatpush1.bf16.msra.mxu0 %v495
  %1457 = vmatprep.subr.bf16.mxu0 0
  %1458 = vmatpush2.bf16.msra.mxu0 %v510
  %1459 = vmatprep.subr.bf16.mxu0 0
  %1460 = vmatpush2.bf16.msra.mxu0 %v509
  %1461 = vmatprep.subr.bf16.mxu0 0
  %1462 = vmatpush2.bf16.msra.mxu0 %v508
  %1463 = vmatprep.subr.bf16.mxu0 0
  %1464 = vmatpush2.bf16.msra.mxu0 %v507
  %1465 = vmatprep.subr.bf16.mxu0 0
  %1466 = vmatpush2.bf16.msra.mxu0 %v506
  %1467 = vmatprep.subr.bf16.mxu0 0
  %1468 = vmatpush2.bf16.msra.mxu0 %v505
  %1469 = vmatprep.subr.bf16.mxu0 0
  %1470 = vmatpush2.bf16.msra.mxu0 %v504
  %1471 = vmatprep.subr.bf16.mxu0 0
  %1472 = vmatpush2.bf16.msra.mxu0 %v503
  %1473 = vmatprep.mubr.bf16.mxu0 %v1028
  %1474 = vmatmul.mubr.bf16.gmra.mxu0 %v1027
  %v1475 = vpop.f32.mrf.mxu0
  %v1476 = vadd.f32 %v1379, %v1475
  %v1477 = vpop.f32.mrf.mxu0
  %v1478 = vpop.f32.mrf.mxu0
  %v1479 = vadd.f32 %v1382, %v1478
  %v1480 = vpop.f32.mrf.mxu0
  %1481 = vmatprep.mubr.bf16.mxu0 %v1042
  %1482 = vmatmul.mubr.bf16.gmra.mxu0 %v1041
  %v1483 = vpop.f32.mrf.mxu0
  %v1484 = vadd.f32 %v1387, %v1483
  %v1485 = vpop.f32.mrf.mxu0
  %v1486 = vpop.f32.mrf.mxu0
  %v1487 = vadd.f32 %v1390, %v1486
  %v1488 = vpop.f32.mrf.mxu0
  %1489 = vmatprep.mubr.bf16.mxu0 %v1056
  %1490 = vmatmul.mubr.bf16.gmra.mxu0 %v1055
  %v1491 = vpop.f32.mrf.mxu0
  %v1492 = vadd.f32 %v1395, %v1491
  %v1493 = vpop.f32.mrf.mxu0
  %v1494 = vpop.f32.mrf.mxu0
  %v1495 = vadd.f32 %v1398, %v1494
  %v1496 = vpop.f32.mrf.mxu0
  %1497 = vmatprep.mubr.bf16.mxu0 %v1070
  %1498 = vmatmul.mubr.bf16.gmra.mxu0 %v1069
  %v1499 = vpop.f32.mrf.mxu0
  %v1500 = vadd.f32 %v1403, %v1499
  %v1501 = vpop.f32.mrf.mxu0
  %v1502 = vpop.f32.mrf.mxu0
  %v1503 = vadd.f32 %v1406, %v1502
  %v1504 = vpop.f32.mrf.mxu0
  %1505 = vmatprep.mubr.bf16.mxu0 %v1084
  %1506 = vmatmul.mubr.bf16.gmra.mxu0 %v1083
  %v1507 = vpop.f32.mrf.mxu0
  %v1508 = vadd.f32 %v1411, %v1507
  %v1509 = vpop.f32.mrf.mxu0
  %v1510 = vpop.f32.mrf.mxu0
  %v1511 = vadd.f32 %v1414, %v1510
  %v1512 = vpop.f32.mrf.mxu0
  %1513 = vmatprep.mubr.bf16.mxu0 %v1098
  %1514 = vmatmul.mubr.bf16.gmra.mxu0 %v1097
  %v1515 = vpop.f32.mrf.mxu0
  %v1516 = vadd.f32 %v1419, %v1515
  %v1517 = vpop.f32.mrf.mxu0
  %v1518 = vpop.f32.mrf.mxu0
  %v1519 = vadd.f32 %v1422, %v1518
  %v1520 = vpop.f32.mrf.mxu0
  %1521 = vmatprep.mubr.bf16.mxu0 %v1112
  %1522 = vmatmul.mubr.bf16.gmra.mxu0 %v1111
  %v1523 = vpop.f32.mrf.mxu0
  %v1524 = vadd.f32 %v1427, %v1523
  %v1525 = vpop.f32.mrf.mxu0
  %v1526 = vpop.f32.mrf.mxu0
  %v1527 = vadd.f32 %v1430, %v1526
  %v1528 = vpop.f32.mrf.mxu0
  %1529 = vmatprep.mubr.bf16.mxu0 %v1126
  %1530 = vmatmul.mubr.bf16.gmra.mxu0 %v1125
  %v1531 = vpop.f32.mrf.mxu0
  %v1532 = vadd.f32 %v1435, %v1531
  %v1533 = vpop.f32.mrf.mxu0
  %v1534 = vpop.f32.mrf.mxu0
  %v1535 = vadd.f32 %v1438, %v1534
  %v1536 = vpop.f32.mrf.mxu0
  %1537 = vdwg.mxu0
  %1538 = vmatprep.subr.bf16.mxu0 0
  %1539 = vmatpush1.bf16.msra.mxu0 %v518
  %1540 = vmatprep.subr.bf16.mxu0 0
  %1541 = vmatpush1.bf16.msra.mxu0 %v517
  %1542 = vmatprep.subr.bf16.mxu0 0
  %1543 = vmatpush1.bf16.msra.mxu0 %v516
  %1544 = vmatprep.subr.bf16.mxu0 0
  %1545 = vmatpush1.bf16.msra.mxu0 %v515
  %1546 = vmatprep.subr.bf16.mxu0 0
  %1547 = vmatpush1.bf16.msra.mxu0 %v514
  %1548 = vmatprep.subr.bf16.mxu0 0
  %1549 = vmatpush1.bf16.msra.mxu0 %v513
  %1550 = vmatprep.subr.bf16.mxu0 0
  %1551 = vmatpush1.bf16.msra.mxu0 %v512
  %1552 = vmatprep.subr.bf16.mxu0 0
  %1553 = vmatpush1.bf16.msra.mxu0 %v511
  %1554 = vmatprep.subr.bf16.mxu0 0
  %1555 = vmatpush2.bf16.msra.mxu0 %v526
  %1556 = vmatprep.subr.bf16.mxu0 0
  %1557 = vmatpush2.bf16.msra.mxu0 %v525
  %1558 = vmatprep.subr.bf16.mxu0 0
  %1559 = vmatpush2.bf16.msra.mxu0 %v524
  %1560 = vmatprep.subr.bf16.mxu0 0
  %1561 = vmatpush2.bf16.msra.mxu0 %v523
  %1562 = vmatprep.subr.bf16.mxu0 0
  %1563 = vmatpush2.bf16.msra.mxu0 %v522
  %1564 = vmatprep.subr.bf16.mxu0 0
  %1565 = vmatpush2.bf16.msra.mxu0 %v521
  %1566 = vmatprep.subr.bf16.mxu0 0
  %1567 = vmatpush2.bf16.msra.mxu0 %v520
  %1568 = vmatprep.subr.bf16.mxu0 0
  %1569 = vmatpush2.bf16.msra.mxu0 %v519
  %1570 = vmatprep.mubr.bf16.mxu0 %v1030
  %1571 = vmatmul.mubr.bf16.gmra.mxu0 %v1029
  %v1572 = vpop.f32.mrf.mxu0
  %v1573 = vadd.f32 %v1476, %v1572
  %v1574 = vpop.f32.mrf.mxu0
  %v1575 = vpop.f32.mrf.mxu0
  %v1576 = vadd.f32 %v1479, %v1575
  %v1577 = vpop.f32.mrf.mxu0
  %1578 = vmatprep.mubr.bf16.mxu0 %v1044
  %1579 = vmatmul.mubr.bf16.gmra.mxu0 %v1043
  %v1580 = vpop.f32.mrf.mxu0
  %v1581 = vadd.f32 %v1484, %v1580
  %v1582 = vpop.f32.mrf.mxu0
  %v1583 = vpop.f32.mrf.mxu0
  %v1584 = vadd.f32 %v1487, %v1583
  %v1585 = vpop.f32.mrf.mxu0
  %1586 = vmatprep.mubr.bf16.mxu0 %v1058
  %1587 = vmatmul.mubr.bf16.gmra.mxu0 %v1057
  %v1588 = vpop.f32.mrf.mxu0
  %v1589 = vadd.f32 %v1492, %v1588
  %v1590 = vpop.f32.mrf.mxu0
  %v1591 = vpop.f32.mrf.mxu0
  %v1592 = vadd.f32 %v1495, %v1591
  %v1593 = vpop.f32.mrf.mxu0
  %1594 = vmatprep.mubr.bf16.mxu0 %v1072
  %1595 = vmatmul.mubr.bf16.gmra.mxu0 %v1071
  %v1596 = vpop.f32.mrf.mxu0
  %v1597 = vadd.f32 %v1500, %v1596
  %v1598 = vpop.f32.mrf.mxu0
  %v1599 = vpop.f32.mrf.mxu0
  %v1600 = vadd.f32 %v1503, %v1599
  %v1601 = vpop.f32.mrf.mxu0
  %1602 = vmatprep.mubr.bf16.mxu0 %v1086
  %1603 = vmatmul.mubr.bf16.gmra.mxu0 %v1085
  %v1604 = vpop.f32.mrf.mxu0
  %v1605 = vadd.f32 %v1508, %v1604
  %v1606 = vpop.f32.mrf.mxu0
  %v1607 = vpop.f32.mrf.mxu0
  %v1608 = vadd.f32 %v1511, %v1607
  %v1609 = vpop.f32.mrf.mxu0
  %1610 = vmatprep.mubr.bf16.mxu0 %v1100
  %1611 = vmatmul.mubr.bf16.gmra.mxu0 %v1099
  %v1612 = vpop.f32.mrf.mxu0
  %v1613 = vadd.f32 %v1516, %v1612
  %v1614 = vpop.f32.mrf.mxu0
  %v1615 = vpop.f32.mrf.mxu0
  %v1616 = vadd.f32 %v1519, %v1615
  %v1617 = vpop.f32.mrf.mxu0
  %1618 = vmatprep.mubr.bf16.mxu0 %v1114
  %1619 = vmatmul.mubr.bf16.gmra.mxu0 %v1113
  %v1620 = vpop.f32.mrf.mxu0
  %v1621 = vadd.f32 %v1524, %v1620
  %v1622 = vpop.f32.mrf.mxu0
  %v1623 = vpop.f32.mrf.mxu0
  %v1624 = vadd.f32 %v1527, %v1623
  %v1625 = vpop.f32.mrf.mxu0
  %1626 = vmatprep.mubr.bf16.mxu0 %v1128
  %1627 = vmatmul.mubr.bf16.gmra.mxu0 %v1127
  %v1628 = vpop.f32.mrf.mxu0
  %v1629 = vadd.f32 %v1532, %v1628
  %v1630 = vpop.f32.mrf.mxu0
  %v1631 = vpop.f32.mrf.mxu0
  %v1632 = vadd.f32 %v1535, %v1631
  %v1633 = vpop.f32.mrf.mxu0
  %1634 = vdwg.mxu0
  %1635 = vmatprep.subr.bf16.mxu0 0
  %1636 = vmatpush1.bf16.msra.mxu0 %v534
  %1637 = vmatprep.subr.bf16.mxu0 0
  %1638 = vmatpush1.bf16.msra.mxu0 %v533
  %1639 = vmatprep.subr.bf16.mxu0 0
  %1640 = vmatpush1.bf16.msra.mxu0 %v532
  %1641 = vmatprep.subr.bf16.mxu0 0
  %1642 = vmatpush1.bf16.msra.mxu0 %v531
  %1643 = vmatprep.subr.bf16.mxu0 0
  %1644 = vmatpush1.bf16.msra.mxu0 %v530
  %1645 = vmatprep.subr.bf16.mxu0 0
  %1646 = vmatpush1.bf16.msra.mxu0 %v529
  %1647 = vmatprep.subr.bf16.mxu0 0
  %1648 = vmatpush1.bf16.msra.mxu0 %v528
  %1649 = vmatprep.subr.bf16.mxu0 0
  %1650 = vmatpush1.bf16.msra.mxu0 %v527
  %1651 = vmatprep.subr.bf16.mxu0 0
  %1652 = vmatpush2.bf16.msra.mxu0 %v542
  %1653 = vmatprep.subr.bf16.mxu0 0
  %1654 = vmatpush2.bf16.msra.mxu0 %v541
  %1655 = vmatprep.subr.bf16.mxu0 0
  %1656 = vmatpush2.bf16.msra.mxu0 %v540
  %1657 = vmatprep.subr.bf16.mxu0 0
  %1658 = vmatpush2.bf16.msra.mxu0 %v539
  %1659 = vmatprep.subr.bf16.mxu0 0
  %1660 = vmatpush2.bf16.msra.mxu0 %v538
  %1661 = vmatprep.subr.bf16.mxu0 0
  %1662 = vmatpush2.bf16.msra.mxu0 %v537
  %1663 = vmatprep.subr.bf16.mxu0 0
  %1664 = vmatpush2.bf16.msra.mxu0 %v536
  %1665 = vmatprep.subr.bf16.mxu0 0
  %1666 = vmatpush2.bf16.msra.mxu0 %v535
  %1667 = vmatprep.mubr.bf16.mxu0 %v1032
  %1668 = vmatmul.mubr.bf16.gmra.mxu0 %v1031
  %v1669 = vpop.f32.mrf.mxu0
  %v1670 = vadd.f32 %v1573, %v1669
  %v1671 = vpop.f32.mrf.mxu0
  %v1672 = vpop.f32.mrf.mxu0
  %v1673 = vadd.f32 %v1576, %v1672
  %v1674 = vpop.f32.mrf.mxu0
  %1675 = vmatprep.mubr.bf16.mxu0 %v1046
  %1676 = vmatmul.mubr.bf16.gmra.mxu0 %v1045
  %v1677 = vpop.f32.mrf.mxu0
  %v1678 = vadd.f32 %v1581, %v1677
  %v1679 = vpop.f32.mrf.mxu0
  %v1680 = vpop.f32.mrf.mxu0
  %v1681 = vadd.f32 %v1584, %v1680
  %v1682 = vpop.f32.mrf.mxu0
  %1683 = vmatprep.mubr.bf16.mxu0 %v1060
  %1684 = vmatmul.mubr.bf16.gmra.mxu0 %v1059
  %v1685 = vpop.f32.mrf.mxu0
  %v1686 = vadd.f32 %v1589, %v1685
  %v1687 = vpop.f32.mrf.mxu0
  %v1688 = vpop.f32.mrf.mxu0
  %v1689 = vadd.f32 %v1592, %v1688
  %v1690 = vpop.f32.mrf.mxu0
  %1691 = vmatprep.mubr.bf16.mxu0 %v1074
  %1692 = vmatmul.mubr.bf16.gmra.mxu0 %v1073
  %v1693 = vpop.f32.mrf.mxu0
  %v1694 = vadd.f32 %v1597, %v1693
  %v1695 = vpop.f32.mrf.mxu0
  %v1696 = vpop.f32.mrf.mxu0
  %v1697 = vadd.f32 %v1600, %v1696
  %v1698 = vpop.f32.mrf.mxu0
  %1699 = vmatprep.mubr.bf16.mxu0 %v1088
  %1700 = vmatmul.mubr.bf16.gmra.mxu0 %v1087
  %v1701 = vpop.f32.mrf.mxu0
  %v1702 = vadd.f32 %v1605, %v1701
  %v1703 = vpop.f32.mrf.mxu0
  %v1704 = vpop.f32.mrf.mxu0
  %v1705 = vadd.f32 %v1608, %v1704
  %v1706 = vpop.f32.mrf.mxu0
  %1707 = vmatprep.mubr.bf16.mxu0 %v1102
  %1708 = vmatmul.mubr.bf16.gmra.mxu0 %v1101
  %v1709 = vpop.f32.mrf.mxu0
  %v1710 = vadd.f32 %v1613, %v1709
  %v1711 = vpop.f32.mrf.mxu0
  %v1712 = vpop.f32.mrf.mxu0
  %v1713 = vadd.f32 %v1616, %v1712
  %v1714 = vpop.f32.mrf.mxu0
  %1715 = vmatprep.mubr.bf16.mxu0 %v1116
  %1716 = vmatmul.mubr.bf16.gmra.mxu0 %v1115
  %v1717 = vpop.f32.mrf.mxu0
  %v1718 = vadd.f32 %v1621, %v1717
  %v1719 = vpop.f32.mrf.mxu0
  %v1720 = vpop.f32.mrf.mxu0
  %v1721 = vadd.f32 %v1624, %v1720
  %v1722 = vpop.f32.mrf.mxu0
  %1723 = vmatprep.mubr.bf16.mxu0 %v1130
  %1724 = vmatmul.mubr.bf16.gmra.mxu0 %v1129
  %v1725 = vpop.f32.mrf.mxu0
  %v1726 = vadd.f32 %v1629, %v1725
  %v1727 = vpop.f32.mrf.mxu0
  %v1728 = vpop.f32.mrf.mxu0
  %v1729 = vadd.f32 %v1632, %v1728
  %v1730 = vpop.f32.mrf.mxu0
  %1731 = vdwg.mxu0
  %1732 = vmatprep.subr.bf16.mxu0 0
  %1733 = vmatpush1.bf16.msra.mxu0 %v550
  %1734 = vmatprep.subr.bf16.mxu0 0
  %1735 = vmatpush1.bf16.msra.mxu0 %v549
  %1736 = vmatprep.subr.bf16.mxu0 0
  %1737 = vmatpush1.bf16.msra.mxu0 %v548
  %1738 = vmatprep.subr.bf16.mxu0 0
  %1739 = vmatpush1.bf16.msra.mxu0 %v547
  %1740 = vmatprep.subr.bf16.mxu0 0
  %1741 = vmatpush1.bf16.msra.mxu0 %v546
  %1742 = vmatprep.subr.bf16.mxu0 0
  %1743 = vmatpush1.bf16.msra.mxu0 %v545
  %1744 = vmatprep.subr.bf16.mxu0 0
  %1745 = vmatpush1.bf16.msra.mxu0 %v544
  %1746 = vmatprep.subr.bf16.mxu0 0
  %1747 = vmatpush1.bf16.msra.mxu0 %v543
  %1748 = vmatprep.subr.bf16.mxu0 0
  %1749 = vmatpush2.bf16.msra.mxu0 %v558
  %1750 = vmatprep.subr.bf16.mxu0 0
  %1751 = vmatpush2.bf16.msra.mxu0 %v557
  %1752 = vmatprep.subr.bf16.mxu0 0
  %1753 = vmatpush2.bf16.msra.mxu0 %v556
  %1754 = vmatprep.subr.bf16.mxu0 0
  %1755 = vmatpush2.bf16.msra.mxu0 %v555
  %1756 = vmatprep.subr.bf16.mxu0 0
  %1757 = vmatpush2.bf16.msra.mxu0 %v554
  %1758 = vmatprep.subr.bf16.mxu0 0
  %1759 = vmatpush2.bf16.msra.mxu0 %v553
  %1760 = vmatprep.subr.bf16.mxu0 0
  %1761 = vmatpush2.bf16.msra.mxu0 %v552
  %1762 = vmatprep.subr.bf16.mxu0 0
  %1763 = vmatpush2.bf16.msra.mxu0 %v551
  %1764 = vmatprep.mubr.bf16.mxu0 %v1034
  %1765 = vmatmul.mubr.bf16.gmra.mxu0 %v1033
  %v1766 = vpop.f32.mrf.mxu0
  %v1767 = vadd.f32 %v1670, %v1766
  %v1768 = vpop.f32.mrf.mxu0
  %v1769 = vpop.f32.mrf.mxu0
  %v1770 = vadd.f32 %v1673, %v1769
  %v1771 = vpop.f32.mrf.mxu0
  %1772 = vmatprep.mubr.bf16.mxu0 %v1048
  %1773 = vmatmul.mubr.bf16.gmra.mxu0 %v1047
  %v1774 = vpop.f32.mrf.mxu0
  %v1775 = vadd.f32 %v1678, %v1774
  %v1776 = vpop.f32.mrf.mxu0
  %v1777 = vpop.f32.mrf.mxu0
  %v1778 = vadd.f32 %v1681, %v1777
  %v1779 = vpop.f32.mrf.mxu0
  %1780 = vmatprep.mubr.bf16.mxu0 %v1062
  %1781 = vmatmul.mubr.bf16.gmra.mxu0 %v1061
  %v1782 = vpop.f32.mrf.mxu0
  %v1783 = vadd.f32 %v1686, %v1782
  %v1784 = vpop.f32.mrf.mxu0
  %v1785 = vpop.f32.mrf.mxu0
  %v1786 = vadd.f32 %v1689, %v1785
  %v1787 = vpop.f32.mrf.mxu0
  %1788 = vmatprep.mubr.bf16.mxu0 %v1076
  %1789 = vmatmul.mubr.bf16.gmra.mxu0 %v1075
  %v1790 = vpop.f32.mrf.mxu0
  %v1791 = vadd.f32 %v1694, %v1790
  %v1792 = vpop.f32.mrf.mxu0
  %v1793 = vpop.f32.mrf.mxu0
  %v1794 = vadd.f32 %v1697, %v1793
  %v1795 = vpop.f32.mrf.mxu0
  %1796 = vmatprep.mubr.bf16.mxu0 %v1090
  %1797 = vmatmul.mubr.bf16.gmra.mxu0 %v1089
  %v1798 = vpop.f32.mrf.mxu0
  %v1799 = vadd.f32 %v1702, %v1798
  %v1800 = vpop.f32.mrf.mxu0
  %v1801 = vpop.f32.mrf.mxu0
  %v1802 = vadd.f32 %v1705, %v1801
  %v1803 = vpop.f32.mrf.mxu0
  %1804 = vmatprep.mubr.bf16.mxu0 %v1104
  %1805 = vmatmul.mubr.bf16.gmra.mxu0 %v1103
  %v1806 = vpop.f32.mrf.mxu0
  %v1807 = vadd.f32 %v1710, %v1806
  %v1808 = vpop.f32.mrf.mxu0
  %v1809 = vpop.f32.mrf.mxu0
  %v1810 = vadd.f32 %v1713, %v1809
  %v1811 = vpop.f32.mrf.mxu0
  %1812 = vmatprep.mubr.bf16.mxu0 %v1118
  %1813 = vmatmul.mubr.bf16.gmra.mxu0 %v1117
  %v1814 = vpop.f32.mrf.mxu0
  %v1815 = vadd.f32 %v1718, %v1814
  %v1816 = vpop.f32.mrf.mxu0
  %v1817 = vpop.f32.mrf.mxu0
  %v1818 = vadd.f32 %v1721, %v1817
  %v1819 = vpop.f32.mrf.mxu0
  %1820 = vmatprep.mubr.bf16.mxu0 %v1132
  %1821 = vmatmul.mubr.bf16.gmra.mxu0 %v1131
  %v1822 = vpop.f32.mrf.mxu0
  %v1823 = vadd.f32 %v1726, %v1822
  %v1824 = vpop.f32.mrf.mxu0
  %v1825 = vpop.f32.mrf.mxu0
  %v1826 = vadd.f32 %v1729, %v1825
  %v1827 = vpop.f32.mrf.mxu0
  %1828 = vdwg.mxu0
  %1829 = vmatprep.subr.bf16.mxu0 0
  %1830 = vmatpush1.bf16.msra.mxu0 %v566
  %1831 = vmatprep.subr.bf16.mxu0 0
  %1832 = vmatpush1.bf16.msra.mxu0 %v565
  %1833 = vmatprep.subr.bf16.mxu0 0
  %1834 = vmatpush1.bf16.msra.mxu0 %v564
  %1835 = vmatprep.subr.bf16.mxu0 0
  %1836 = vmatpush1.bf16.msra.mxu0 %v563
  %1837 = vmatprep.subr.bf16.mxu0 0
  %1838 = vmatpush1.bf16.msra.mxu0 %v562
  %1839 = vmatprep.subr.bf16.mxu0 0
  %1840 = vmatpush1.bf16.msra.mxu0 %v561
  %1841 = vmatprep.subr.bf16.mxu0 0
  %1842 = vmatpush1.bf16.msra.mxu0 %v560
  %1843 = vmatprep.subr.bf16.mxu0 0
  %1844 = vmatpush1.bf16.msra.mxu0 %v559
  %1845 = vmatprep.subr.bf16.mxu0 0
  %1846 = vmatpush2.bf16.msra.mxu0 %v574
  %1847 = vmatprep.subr.bf16.mxu0 0
  %1848 = vmatpush2.bf16.msra.mxu0 %v573
  %1849 = vmatprep.subr.bf16.mxu0 0
  %1850 = vmatpush2.bf16.msra.mxu0 %v572
  %1851 = vmatprep.subr.bf16.mxu0 0
  %1852 = vmatpush2.bf16.msra.mxu0 %v571
  %1853 = vmatprep.subr.bf16.mxu0 0
  %1854 = vmatpush2.bf16.msra.mxu0 %v570
  %1855 = vmatprep.subr.bf16.mxu0 0
  %1856 = vmatpush2.bf16.msra.mxu0 %v569
  %1857 = vmatprep.subr.bf16.mxu0 0
  %1858 = vmatpush2.bf16.msra.mxu0 %v568
  %1859 = vmatprep.subr.bf16.mxu0 0
  %1860 = vmatpush2.bf16.msra.mxu0 %v567
  %1861 = vmatprep.mubr.bf16.mxu0 %v1036
  %1862 = vmatmul.mubr.bf16.gmra.mxu0 %v1035
  %v1863 = vpop.f32.mrf.mxu0
  %v1864 = vadd.f32 %v1767, %v1863
  %v1865 = vpop.f32.mrf.mxu0
  %v1866 = vpop.f32.mrf.mxu0
  %v1867 = vadd.f32 %v1770, %v1866
  %v1868 = vpop.f32.mrf.mxu0
  %1869 = vmatprep.mubr.bf16.mxu0 %v1050
  %1870 = vmatmul.mubr.bf16.gmra.mxu0 %v1049
  %v1871 = vpop.f32.mrf.mxu0
  %v1872 = vadd.f32 %v1775, %v1871
  %v1873 = vpop.f32.mrf.mxu0
  %v1874 = vpop.f32.mrf.mxu0
  %v1875 = vadd.f32 %v1778, %v1874
  %v1876 = vpop.f32.mrf.mxu0
  %1877 = vmatprep.mubr.bf16.mxu0 %v1064
  %1878 = vmatmul.mubr.bf16.gmra.mxu0 %v1063
  %v1879 = vpop.f32.mrf.mxu0
  %v1880 = vadd.f32 %v1783, %v1879
  %v1881 = vpop.f32.mrf.mxu0
  %v1882 = vpop.f32.mrf.mxu0
  %v1883 = vadd.f32 %v1786, %v1882
  %v1884 = vpop.f32.mrf.mxu0
  %1885 = vmatprep.mubr.bf16.mxu0 %v1078
  %1886 = vmatmul.mubr.bf16.gmra.mxu0 %v1077
  %v1887 = vpop.f32.mrf.mxu0
  %v1888 = vadd.f32 %v1791, %v1887
  %v1889 = vpop.f32.mrf.mxu0
  %v1890 = vpop.f32.mrf.mxu0
  %v1891 = vadd.f32 %v1794, %v1890
  %v1892 = vpop.f32.mrf.mxu0
  %1893 = vmatprep.mubr.bf16.mxu0 %v1092
  %1894 = vmatmul.mubr.bf16.gmra.mxu0 %v1091
  %v1895 = vpop.f32.mrf.mxu0
  %v1896 = vadd.f32 %v1799, %v1895
  %v1897 = vpop.f32.mrf.mxu0
  %v1898 = vpop.f32.mrf.mxu0
  %v1899 = vadd.f32 %v1802, %v1898
  %v1900 = vpop.f32.mrf.mxu0
  %1901 = vmatprep.mubr.bf16.mxu0 %v1106
  %1902 = vmatmul.mubr.bf16.gmra.mxu0 %v1105
  %v1903 = vpop.f32.mrf.mxu0
  %v1904 = vadd.f32 %v1807, %v1903
  %v1905 = vpop.f32.mrf.mxu0
  %v1906 = vpop.f32.mrf.mxu0
  %v1907 = vadd.f32 %v1810, %v1906
  %v1908 = vpop.f32.mrf.mxu0
  %1909 = vmatprep.mubr.bf16.mxu0 %v1120
  %1910 = vmatmul.mubr.bf16.gmra.mxu0 %v1119
  %v1911 = vpop.f32.mrf.mxu0
  %v1912 = vadd.f32 %v1815, %v1911
  %v1913 = vpop.f32.mrf.mxu0
  %v1914 = vpop.f32.mrf.mxu0
  %v1915 = vadd.f32 %v1818, %v1914
  %v1916 = vpop.f32.mrf.mxu0
  %1917 = vmatprep.mubr.bf16.mxu0 %v1134
  %1918 = vmatmul.mubr.bf16.gmra.mxu0 %v1133
  %v1919 = vpop.f32.mrf.mxu0
  %v1920 = vadd.f32 %v1823, %v1919
  %v1921 = vpop.f32.mrf.mxu0
  %v1922 = vpop.f32.mrf.mxu0
  %v1923 = vadd.f32 %v1826, %v1922
  %v1924 = vpop.f32.mrf.mxu0
  %1925 = vdwg.mxu0
  %vm1926 = vcmask 400384
  %v1927 = vsel %vm1926, %v1864, 0.0
  %1928 = vadd.xlane.f32.xlu0 %v1927
  %v1929 = vpop.xlane.xlu0 %1928
  %v1930 = vsel %vm1926, %v1867, 0.0
  %1931 = vadd.xlane.f32.xlu0 %v1930
  %v1932 = vpop.xlane.xlu0 %1931
  %v1933 = vsel %vm1926, %v1872, 0.0
  %1934 = vadd.xlane.f32.xlu0 %v1933
  %v1935 = vpop.xlane.xlu0 %1934
  %v1936 = vsel %vm1926, %v1875, 0.0
  %1937 = vadd.xlane.f32.xlu0 %v1936
  %v1938 = vpop.xlane.xlu0 %1937
  %v1939 = vsel %vm1926, %v1880, 0.0
  %1940 = vadd.xlane.f32.xlu0 %v1939
  %v1941 = vpop.xlane.xlu0 %1940
  %v1942 = vsel %vm1926, %v1883, 0.0
  %1943 = vadd.xlane.f32.xlu0 %v1942
  %v1944 = vpop.xlane.xlu0 %1943
  %v1945 = vsel %vm1926, %v1888, 0.0
  %1946 = vadd.xlane.f32.xlu0 %v1945
  %v1947 = vpop.xlane.xlu0 %1946
  %v1948 = vsel %vm1926, %v1891, 0.0
  %1949 = vadd.xlane.f32.xlu0 %v1948
  %v1950 = vpop.xlane.xlu0 %1949
  %v1951 = vsel %vm1926, %v1896, 0.0
  %1952 = vadd.xlane.f32.xlu0 %v1951
  %v1953 = vpop.xlane.xlu0 %1952
  %v1954 = vsel %vm1926, %v1899, 0.0
  %1955 = vadd.xlane.f32.xlu0 %v1954
  %v1956 = vpop.xlane.xlu0 %1955
  %v1957 = vsel %vm1926, %v1904, 0.0
  %1958 = vadd.xlane.f32.xlu0 %v1957
  %v1959 = vpop.xlane.xlu0 %1958
  %v1960 = vsel %vm1926, %v1907, 0.0
  %1961 = vadd.xlane.f32.xlu0 %v1960
  %v1962 = vpop.xlane.xlu0 %1961
  %v1963 = vsel %vm1926, %v1912, 0.0
  %1964 = vadd.xlane.f32.xlu0 %v1963
  %v1965 = vpop.xlane.xlu0 %1964
  %v1966 = vsel %vm1926, %v1915, 0.0
  %1967 = vadd.xlane.f32.xlu0 %v1966
  %v1968 = vpop.xlane.xlu0 %1967
  %v1969 = vsel %vm1926, %v1920, 0.0
  %1970 = vadd.xlane.f32.xlu0 %v1969
  %v1971 = vpop.xlane.xlu0 %1970
  %v1972 = vsel %vm1926, %v1923, 0.0
  %1973 = vadd.xlane.f32.xlu0 %v1972
  %v1974 = vpop.xlane.xlu0 %1973
  %v1975 = vmul.f32 %v1864, %v1864
  %v1976 = vmul.f32 %v1867, %v1867
  %v1977 = vmul.f32 %v1872, %v1872
  %v1978 = vmul.f32 %v1875, %v1875
  %v1979 = vmul.f32 %v1880, %v1880
  %v1980 = vmul.f32 %v1883, %v1883
  %v1981 = vmul.f32 %v1888, %v1888
  %v1982 = vmul.f32 %v1891, %v1891
  %v1983 = vmul.f32 %v1896, %v1896
  %v1984 = vmul.f32 %v1899, %v1899
  %v1985 = vmul.f32 %v1904, %v1904
  %v1986 = vmul.f32 %v1907, %v1907
  %v1987 = vmul.f32 %v1912, %v1912
  %v1988 = vmul.f32 %v1915, %v1915
  %v1989 = vmul.f32 %v1920, %v1920
  %v1990 = vmul.f32 %v1923, %v1923
  %v1991 = vsel %vm1926, %v1975, 0.0
  %1992 = vadd.xlane.f32.xlu0 %v1991
  %v1993 = vpop.xlane.xlu0 %1992
  %v1994 = vsel %vm1926, %v1976, 0.0
  %1995 = vadd.xlane.f32.xlu0 %v1994
  %v1996 = vpop.xlane.xlu0 %1995
  %v1997 = vsel %vm1926, %v1977, 0.0
  %1998 = vadd.xlane.f32.xlu0 %v1997
  %v1999 = vpop.xlane.xlu0 %1998
  %v2000 = vsel %vm1926, %v1978, 0.0
  %2001 = vadd.xlane.f32.xlu0 %v2000
  %v2002 = vpop.xlane.xlu0 %2001
  %v2003 = vsel %vm1926, %v1979, 0.0
  %2004 = vadd.xlane.f32.xlu0 %v2003
  %v2005 = vpop.xlane.xlu0 %2004
  %v2006 = vsel %vm1926, %v1980, 0.0
  %2007 = vadd.xlane.f32.xlu0 %v2006
  %v2008 = vpop.xlane.xlu0 %2007
  %v2009 = vsel %vm1926, %v1981, 0.0
  %2010 = vadd.xlane.f32.xlu0 %v2009
  %v2011 = vpop.xlane.xlu0 %2010
  %v2012 = vsel %vm1926, %v1982, 0.0
  %2013 = vadd.xlane.f32.xlu0 %v2012
  %v2014 = vpop.xlane.xlu0 %2013
  %v2015 = vsel %vm1926, %v1983, 0.0
  %2016 = vadd.xlane.f32.xlu0 %v2015
  %v2017 = vpop.xlane.xlu0 %2016
  %v2018 = vsel %vm1926, %v1984, 0.0
  %2019 = vadd.xlane.f32.xlu0 %v2018
  %v2020 = vpop.xlane.xlu0 %2019
  %v2021 = vsel %vm1926, %v1985, 0.0
  %2022 = vadd.xlane.f32.xlu0 %v2021
  %v2023 = vpop.xlane.xlu0 %2022
  %v2024 = vsel %vm1926, %v1986, 0.0
  %2025 = vadd.xlane.f32.xlu0 %v2024
  %v2026 = vpop.xlane.xlu0 %2025
  %v2027 = vsel %vm1926, %v1987, 0.0
  %2028 = vadd.xlane.f32.xlu0 %v2027
  %v2029 = vpop.xlane.xlu0 %2028
  %v2030 = vsel %vm1926, %v1988, 0.0
  %2031 = vadd.xlane.f32.xlu0 %v2030
  %v2032 = vpop.xlane.xlu0 %2031
  %v2033 = vsel %vm1926, %v1989, 0.0
  %2034 = vadd.xlane.f32.xlu0 %v2033
  %v2035 = vpop.xlane.xlu0 %2034
  %v2036 = vsel %vm1926, %v1990, 0.0
  %2037 = vadd.xlane.f32.xlu0 %v2036
  %v2038 = vpop.xlane.xlu0 %2037
  %v2039 = vmul.f32 %v1929, 0.020408163
  %v2040 = vmul.f32 %v1932, 0.020408163
  %v2041 = vmul.f32 %v1935, 0.020408163
  %v2042 = vmul.f32 %v1938, 0.020408163
  %v2043 = vmul.f32 %v1941, 0.020408163
  %v2044 = vmul.f32 %v1944, 0.020408163
  %v2045 = vmul.f32 %v1947, 0.020408163
  %v2046 = vmul.f32 %v1950, 0.020408163
  %v2047 = vmul.f32 %v1953, 0.020408163
  %v2048 = vmul.f32 %v1956, 0.020408163
  %v2049 = vmul.f32 %v1959, 0.020408163
  %v2050 = vmul.f32 %v1962, 0.020408163
  %v2051 = vmul.f32 %v1965, 0.020408163
  %v2052 = vmul.f32 %v1968, 0.020408163
  %v2053 = vmul.f32 %v1971, 0.020408163
  %v2054 = vmul.f32 %v1974, 0.020408163
  %v2055 = vmul.f32 %v1993, 0.020408163
  %v2056 = vmul.f32 %v1996, 0.020408163
  %v2057 = vmul.f32 %v1999, 0.020408163
  %v2058 = vmul.f32 %v2002, 0.020408163
  %v2059 = vmul.f32 %v2005, 0.020408163
  %v2060 = vmul.f32 %v2008, 0.020408163
  %v2061 = vmul.f32 %v2011, 0.020408163
  %v2062 = vmul.f32 %v2014, 0.020408163
  %v2063 = vmul.f32 %v2017, 0.020408163
  %v2064 = vmul.f32 %v2020, 0.020408163
  %v2065 = vmul.f32 %v2023, 0.020408163
  %v2066 = vmul.f32 %v2026, 0.020408163
  %v2067 = vmul.f32 %v2029, 0.020408163
  %v2068 = vmul.f32 %v2032, 0.020408163
  %v2069 = vmul.f32 %v2035, 0.020408163
  %v2070 = vmul.f32 %v2038, 0.020408163
  %v2071 = vmul.f32 %v2039, %v2039
  %v2072 = vmul.f32 %v2040, %v2040
  %v2073 = vmul.f32 %v2041, %v2041
  %v2074 = vmul.f32 %v2042, %v2042
  %v2075 = vmul.f32 %v2043, %v2043
  %v2076 = vmul.f32 %v2044, %v2044
  %v2077 = vmul.f32 %v2045, %v2045
  %v2078 = vmul.f32 %v2046, %v2046
  %v2079 = vmul.f32 %v2047, %v2047
  %v2080 = vmul.f32 %v2048, %v2048
  %v2081 = vmul.f32 %v2049, %v2049
  %v2082 = vmul.f32 %v2050, %v2050
  %v2083 = vmul.f32 %v2051, %v2051
  %v2084 = vmul.f32 %v2052, %v2052
  %v2085 = vmul.f32 %v2053, %v2053
  %v2086 = vmul.f32 %v2054, %v2054
  %v2087 = vsub.f32 %v2055, %v2071
  %v2088 = vsub.f32 %v2056, %v2072
  %v2089 = vsub.f32 %v2057, %v2073
  %v2090 = vsub.f32 %v2058, %v2074
  %v2091 = vsub.f32 %v2059, %v2075
  %v2092 = vsub.f32 %v2060, %v2076
  %v2093 = vsub.f32 %v2061, %v2077
  %v2094 = vsub.f32 %v2062, %v2078
  %v2095 = vsub.f32 %v2063, %v2079
  %v2096 = vsub.f32 %v2064, %v2080
  %v2097 = vsub.f32 %v2065, %v2081
  %v2098 = vsub.f32 %v2066, %v2082
  %v2099 = vsub.f32 %v2067, %v2083
  %v2100 = vsub.f32 %v2068, %v2084
  %v2101 = vsub.f32 %v2069, %v2085
  %v2102 = vsub.f32 %v2070, %v2086
  %v2103 = vmax.f32 %v2087, 0.0
  %v2104 = vmax.f32 %v2088, 0.0
  %v2105 = vmax.f32 %v2089, 0.0
  %v2106 = vmax.f32 %v2090, 0.0
  %v2107 = vmax.f32 %v2091, 0.0
  %v2108 = vmax.f32 %v2092, 0.0
  %v2109 = vmax.f32 %v2093, 0.0
  %v2110 = vmax.f32 %v2094, 0.0
  %v2111 = vmax.f32 %v2095, 0.0
  %v2112 = vmax.f32 %v2096, 0.0
  %v2113 = vmax.f32 %v2097, 0.0
  %v2114 = vmax.f32 %v2098, 0.0
  %v2115 = vmax.f32 %v2099, 0.0
  %v2116 = vmax.f32 %v2100, 0.0
  %v2117 = vmax.f32 %v2101, 0.0
  %v2118 = vmax.f32 %v2102, 0.0
  %v2119 = vld [vmem:[%s2] sm:$0x3]
  %v2120 = vlaneseq
  %v2121 = vshrl.u32 %v2120, 7
  %v2122 = vadd.s32 %v2121, 8
  %v2123 = vadd.s32 %v2121, 16
  %v2124 = vadd.s32 %v2121, 24
  %v2125 = vadd.s32 %v2121, 32
  %v2126 = vadd.s32 %v2121, 40
  %v2127 = vadd.s32 %v2121, 48
  %v2128 = vadd.s32 %v2121, 56
  %v2129 = vadd.s32 %v2121, 64
  %v2130 = vadd.s32 %v2121, 72
  %v2131 = vadd.s32 %v2121, 80
  %v2132 = vadd.s32 %v2121, 88
  %v2133 = vadd.s32 %v2121, 96
  %v2134 = vadd.s32 %v2121, 104
  %v2135 = vadd.s32 %v2121, 112
  %v2136 = vadd.s32 %v2121, 120
  %v2137 = vlaneseq
  %v2138 = vand.u32 %v2137, 127
  %vm2139 = vcmp.eq.s32.totalorder %v2121, %v2138
  %vm2140 = vcmp.eq.s32.totalorder %v2122, %v2138
  %vm2141 = vcmp.eq.s32.totalorder %v2123, %v2138
  %vm2142 = vcmp.eq.s32.totalorder %v2124, %v2138
  %vm2143 = vcmp.eq.s32.totalorder %v2125, %v2138
  %vm2144 = vcmp.eq.s32.totalorder %v2126, %v2138
  %vm2145 = vcmp.eq.s32.totalorder %v2127, %v2138
  %vm2146 = vcmp.eq.s32.totalorder %v2128, %v2138
  %vm2147 = vcmp.eq.s32.totalorder %v2129, %v2138
  %vm2148 = vcmp.eq.s32.totalorder %v2130, %v2138
  %vm2149 = vcmp.eq.s32.totalorder %v2131, %v2138
  %vm2150 = vcmp.eq.s32.totalorder %v2132, %v2138
  %vm2151 = vcmp.eq.s32.totalorder %v2133, %v2138
  %vm2152 = vcmp.eq.s32.totalorder %v2134, %v2138
  %vm2153 = vcmp.eq.s32.totalorder %v2135, %v2138
  %vm2154 = vcmp.eq.s32.totalorder %v2136, %v2138
  %v2155 = vsel %vm2139, 1, 0
  %v2156 = vsel %vm2140, 1, 0
  %v2157 = vsel %vm2141, 1, 0
  %v2158 = vsel %vm2142, 1, 0
  %v2159 = vsel %vm2143, 1, 0
  %v2160 = vsel %vm2144, 1, 0
  %v2161 = vsel %vm2145, 1, 0
  %v2162 = vsel %vm2146, 1, 0
  %v2163 = vsel %vm2147, 1, 0
  %v2164 = vsel %vm2148, 1, 0
  %v2165 = vsel %vm2149, 1, 0
  %v2166 = vsel %vm2150, 1, 0
  %v2167 = vsel %vm2151, 1, 0
  %v2168 = vsel %vm2152, 1, 0
  %v2169 = vsel %vm2153, 1, 0
  %v2170 = vsel %vm2154, 1, 0
  %v2171 = vcvt.s32.f32 %v2155
  %v2172 = vcvt.s32.f32 %v2156
  %v2173 = vcvt.s32.f32 %v2157
  %v2174 = vcvt.s32.f32 %v2158
  %v2175 = vcvt.s32.f32 %v2159
  %v2176 = vcvt.s32.f32 %v2160
  %v2177 = vcvt.s32.f32 %v2161
  %v2178 = vcvt.s32.f32 %v2162
  %v2179 = vcvt.s32.f32 %v2163
  %v2180 = vcvt.s32.f32 %v2164
  %v2181 = vcvt.s32.f32 %v2165
  %v2182 = vcvt.s32.f32 %v2166
  %v2183 = vcvt.s32.f32 %v2167
  %v2184 = vcvt.s32.f32 %v2168
  %v2185 = vcvt.s32.f32 %v2169
  %v2186 = vcvt.s32.f32 %v2170
  %v2187 = vlaneseq
  %v2188 = vshrl.u32 %v2187, 7
  %v2189 = vsub.s32 0, %v2188
  %v2190 = vrot.slane %v2119, %v2189
  %v2191 = vmul.f32 %v2171, %v2190
  %v2192 = vmul.f32 %v2172, %v2190
  %v2193 = vmul.f32 %v2173, %v2190
  %v2194 = vmul.f32 %v2174, %v2190
  %v2195 = vmul.f32 %v2175, %v2190
  %v2196 = vmul.f32 %v2176, %v2190
  %v2197 = vmul.f32 %v2177, %v2190
  %v2198 = vmul.f32 %v2178, %v2190
  %v2199 = vmul.f32 %v2179, %v2190
  %v2200 = vmul.f32 %v2180, %v2190
  %v2201 = vmul.f32 %v2181, %v2190
  %v2202 = vmul.f32 %v2182, %v2190
  %v2203 = vmul.f32 %v2183, %v2190
  %v2204 = vmul.f32 %v2184, %v2190
  %v2205 = vmul.f32 %v2185, %v2190
  %v2206 = vmul.f32 %v2186, %v2190
  %2207 = vadd.xlane.f32.xlu0 %v2191
  %v2208 = vpop.xlane.xlu0 %2207
  %2209 = vadd.xlane.f32.xlu0 %v2192
  %v2210 = vpop.xlane.xlu0 %2209
  %2211 = vadd.xlane.f32.xlu0 %v2193
  %v2212 = vpop.xlane.xlu0 %2211
  %2213 = vadd.xlane.f32.xlu0 %v2194
  %v2214 = vpop.xlane.xlu0 %2213
  %2215 = vadd.xlane.f32.xlu0 %v2195
  %v2216 = vpop.xlane.xlu0 %2215
  %2217 = vadd.xlane.f32.xlu0 %v2196
  %v2218 = vpop.xlane.xlu0 %2217
  %2219 = vadd.xlane.f32.xlu0 %v2197
  %v2220 = vpop.xlane.xlu0 %2219
  %2221 = vadd.xlane.f32.xlu0 %v2198
  %v2222 = vpop.xlane.xlu0 %2221
  %2223 = vadd.xlane.f32.xlu0 %v2199
  %v2224 = vpop.xlane.xlu0 %2223
  %2225 = vadd.xlane.f32.xlu0 %v2200
  %v2226 = vpop.xlane.xlu0 %2225
  %2227 = vadd.xlane.f32.xlu0 %v2201
  %v2228 = vpop.xlane.xlu0 %2227
  %2229 = vadd.xlane.f32.xlu0 %v2202
  %v2230 = vpop.xlane.xlu0 %2229
  %2231 = vadd.xlane.f32.xlu0 %v2203
  %v2232 = vpop.xlane.xlu0 %2231
  %2233 = vadd.xlane.f32.xlu0 %v2204
  %v2234 = vpop.xlane.xlu0 %2233
  %2235 = vadd.xlane.f32.xlu0 %v2205
  %v2236 = vpop.xlane.xlu0 %2235
  %2237 = vadd.xlane.f32.xlu0 %v2206
  %v2238 = vpop.xlane.xlu0 %2237
  %v2239 = vlaneseq
  %v2240 = vshrl.u32 %v2239, 7
  %v2241 = vsub.s32 1, %v2240
  %v2242 = vrot.slane %v2119, %v2241
  %v2243 = vmul.f32 %v2171, %v2242
  %v2244 = vmul.f32 %v2172, %v2242
  %v2245 = vmul.f32 %v2173, %v2242
  %v2246 = vmul.f32 %v2174, %v2242
  %v2247 = vmul.f32 %v2175, %v2242
  %v2248 = vmul.f32 %v2176, %v2242
  %v2249 = vmul.f32 %v2177, %v2242
  %v2250 = vmul.f32 %v2178, %v2242
  %v2251 = vmul.f32 %v2179, %v2242
  %v2252 = vmul.f32 %v2180, %v2242
  %v2253 = vmul.f32 %v2181, %v2242
  %v2254 = vmul.f32 %v2182, %v2242
  %v2255 = vmul.f32 %v2183, %v2242
  %v2256 = vmul.f32 %v2184, %v2242
  %v2257 = vmul.f32 %v2185, %v2242
  %v2258 = vmul.f32 %v2186, %v2242
  %2259 = vadd.xlane.f32.xlu0 %v2243
  %v2260 = vpop.xlane.xlu0 %2259
  %2261 = vadd.xlane.f32.xlu0 %v2244
  %v2262 = vpop.xlane.xlu0 %2261
  %2263 = vadd.xlane.f32.xlu0 %v2245
  %v2264 = vpop.xlane.xlu0 %2263
  %2265 = vadd.xlane.f32.xlu0 %v2246
  %v2266 = vpop.xlane.xlu0 %2265
  %2267 = vadd.xlane.f32.xlu0 %v2247
  %v2268 = vpop.xlane.xlu0 %2267
  %2269 = vadd.xlane.f32.xlu0 %v2248
  %v2270 = vpop.xlane.xlu0 %2269
  %2271 = vadd.xlane.f32.xlu0 %v2249
  %v2272 = vpop.xlane.xlu0 %2271
  %2273 = vadd.xlane.f32.xlu0 %v2250
  %v2274 = vpop.xlane.xlu0 %2273
  %2275 = vadd.xlane.f32.xlu0 %v2251
  %v2276 = vpop.xlane.xlu0 %2275
  %2277 = vadd.xlane.f32.xlu0 %v2252
  %v2278 = vpop.xlane.xlu0 %2277
  %2279 = vadd.xlane.f32.xlu0 %v2253
  %v2280 = vpop.xlane.xlu0 %2279
  %2281 = vadd.xlane.f32.xlu0 %v2254
  %v2282 = vpop.xlane.xlu0 %2281
  %2283 = vadd.xlane.f32.xlu0 %v2255
  %v2284 = vpop.xlane.xlu0 %2283
  %2285 = vadd.xlane.f32.xlu0 %v2256
  %v2286 = vpop.xlane.xlu0 %2285
  %2287 = vadd.xlane.f32.xlu0 %v2257
  %v2288 = vpop.xlane.xlu0 %2287
  %2289 = vadd.xlane.f32.xlu0 %v2258
  %v2290 = vpop.xlane.xlu0 %2289
  %v2291 = vadd.f32 %v2103, 1e-05
  %v2292 = vadd.f32 %v2104, 1e-05
  %v2293 = vadd.f32 %v2105, 1e-05
  %v2294 = vadd.f32 %v2106, 1e-05
  %v2295 = vadd.f32 %v2107, 1e-05
  %v2296 = vadd.f32 %v2108, 1e-05
  %v2297 = vadd.f32 %v2109, 1e-05
  %v2298 = vadd.f32 %v2110, 1e-05
  %v2299 = vadd.f32 %v2111, 1e-05
  %v2300 = vadd.f32 %v2112, 1e-05
  %v2301 = vadd.f32 %v2113, 1e-05
  %v2302 = vadd.f32 %v2114, 1e-05
  %v2303 = vadd.f32 %v2115, 1e-05
  %v2304 = vadd.f32 %v2116, 1e-05
  %v2305 = vadd.f32 %v2117, 1e-05
  %v2306 = vadd.f32 %v2118, 1e-05
  %v2307 = vrsqrt.pop %v2291
  %v2308 = vrsqrt.pop %v2292
  %v2309 = vrsqrt.pop %v2293
  %v2310 = vrsqrt.pop %v2294
  %v2311 = vrsqrt.pop %v2295
  %v2312 = vrsqrt.pop %v2296
  %v2313 = vrsqrt.pop %v2297
  %v2314 = vrsqrt.pop %v2298
  %v2315 = vrsqrt.pop %v2299
  %v2316 = vrsqrt.pop %v2300
  %v2317 = vrsqrt.pop %v2301
  %v2318 = vrsqrt.pop %v2302
  %v2319 = vrsqrt.pop %v2303
  %v2320 = vrsqrt.pop %v2304
  %v2321 = vrsqrt.pop %v2305
  %v2322 = vrsqrt.pop %v2306
  %v2323 = vmul.f32 %v2208, %v2307
  %v2324 = vmul.f32 %v2210, %v2308
  %v2325 = vmul.f32 %v2212, %v2309
  %v2326 = vmul.f32 %v2214, %v2310
  %v2327 = vmul.f32 %v2216, %v2311
  %v2328 = vmul.f32 %v2218, %v2312
  %v2329 = vmul.f32 %v2220, %v2313
  %v2330 = vmul.f32 %v2222, %v2314
  %v2331 = vmul.f32 %v2224, %v2315
  %v2332 = vmul.f32 %v2226, %v2316
  %v2333 = vmul.f32 %v2228, %v2317
  %v2334 = vmul.f32 %v2230, %v2318
  %v2335 = vmul.f32 %v2232, %v2319
  %v2336 = vmul.f32 %v2234, %v2320
  %v2337 = vmul.f32 %v2236, %v2321
  %v2338 = vmul.f32 %v2238, %v2322
  %v2339 = vmul.f32 %v2039, %v2323
  %v2340 = vmul.f32 %v2040, %v2324
  %v2341 = vmul.f32 %v2041, %v2325
  %v2342 = vmul.f32 %v2042, %v2326
  %v2343 = vmul.f32 %v2043, %v2327
  %v2344 = vmul.f32 %v2044, %v2328
  %v2345 = vmul.f32 %v2045, %v2329
  %v2346 = vmul.f32 %v2046, %v2330
  %v2347 = vmul.f32 %v2047, %v2331
  %v2348 = vmul.f32 %v2048, %v2332
  %v2349 = vmul.f32 %v2049, %v2333
  %v2350 = vmul.f32 %v2050, %v2334
  %v2351 = vmul.f32 %v2051, %v2335
  %v2352 = vmul.f32 %v2052, %v2336
  %v2353 = vmul.f32 %v2053, %v2337
  %v2354 = vmul.f32 %v2054, %v2338
  %v2355 = vsub.f32 %v2260, %v2339
  %v2356 = vsub.f32 %v2262, %v2340
  %v2357 = vsub.f32 %v2264, %v2341
  %v2358 = vsub.f32 %v2266, %v2342
  %v2359 = vsub.f32 %v2268, %v2343
  %v2360 = vsub.f32 %v2270, %v2344
  %v2361 = vsub.f32 %v2272, %v2345
  %v2362 = vsub.f32 %v2274, %v2346
  %v2363 = vsub.f32 %v2276, %v2347
  %v2364 = vsub.f32 %v2278, %v2348
  %v2365 = vsub.f32 %v2280, %v2349
  %v2366 = vsub.f32 %v2282, %v2350
  %v2367 = vsub.f32 %v2284, %v2351
  %v2368 = vsub.f32 %v2286, %v2352
  %v2369 = vsub.f32 %v2288, %v2353
  %v2370 = vsub.f32 %v2290, %v2354
  %v2371 = vmul.f32 %v1864, %v2323
  %v2372 = vmul.f32 %v1867, %v2324
  %v2373 = vmul.f32 %v1872, %v2325
  %v2374 = vmul.f32 %v1875, %v2326
  %v2375 = vmul.f32 %v1880, %v2327
  %v2376 = vmul.f32 %v1883, %v2328
  %v2377 = vmul.f32 %v1888, %v2329
  %v2378 = vmul.f32 %v1891, %v2330
  %v2379 = vmul.f32 %v1896, %v2331
  %v2380 = vmul.f32 %v1899, %v2332
  %v2381 = vmul.f32 %v1904, %v2333
  %v2382 = vmul.f32 %v1907, %v2334
  %v2383 = vmul.f32 %v1912, %v2335
  %v2384 = vmul.f32 %v1915, %v2336
  %v2385 = vmul.f32 %v1920, %v2337
  %v2386 = vmul.f32 %v1923, %v2338
  %v2387 = vadd.f32 %v2371, %v2355
  %v2388 = vadd.f32 %v2372, %v2356
  %v2389 = vadd.f32 %v2373, %v2357
  %v2390 = vadd.f32 %v2374, %v2358
  %v2391 = vadd.f32 %v2375, %v2359
  %v2392 = vadd.f32 %v2376, %v2360
  %v2393 = vadd.f32 %v2377, %v2361
  %v2394 = vadd.f32 %v2378, %v2362
  %v2395 = vadd.f32 %v2379, %v2363
  %v2396 = vadd.f32 %v2380, %v2364
  %v2397 = vadd.f32 %v2381, %v2365
  %v2398 = vadd.f32 %v2382, %v2366
  %v2399 = vadd.f32 %v2383, %v2367
  %v2400 = vadd.f32 %v2384, %v2368
  %v2401 = vadd.f32 %v2385, %v2369
  %v2402 = vadd.f32 %v2386, %v2370
  %v2403 = vmax.f32 %v2387, 0.0
  %v2404 = vmax.f32 %v2388, 0.0
  %v2405 = vmax.f32 %v2389, 0.0
  %v2406 = vmax.f32 %v2390, 0.0
  %v2407 = vmax.f32 %v2391, 0.0
  %v2408 = vmax.f32 %v2392, 0.0
  %v2409 = vmax.f32 %v2393, 0.0
  %v2410 = vmax.f32 %v2394, 0.0
  %v2411 = vmax.f32 %v2395, 0.0
  %v2412 = vmax.f32 %v2396, 0.0
  %v2413 = vmax.f32 %v2397, 0.0
  %v2414 = vmax.f32 %v2398, 0.0
  %v2415 = vmax.f32 %v2399, 0.0
  %v2416 = vmax.f32 %v2400, 0.0
  %v2417 = vmax.f32 %v2401, 0.0
  %v2418 = vmax.f32 %v2402, 0.0
  %2419 = vst.msk [vmem:[%s3] sm:$0xff] %vm1926, %v2403
  %2420 = vst.msk [vmem:[%s3 + $0x8] sm:$0xff] %vm1926, %v2404
  %2421 = vst.msk [vmem:[%s3 + $0x10] sm:$0xff] %vm1926, %v2405
  %2422 = vst.msk [vmem:[%s3 + $0x18] sm:$0xff] %vm1926, %v2406
  %2423 = vst.msk [vmem:[%s3 + $0x20] sm:$0xff] %vm1926, %v2407
  %2424 = vst.msk [vmem:[%s3 + $0x28] sm:$0xff] %vm1926, %v2408
  %2425 = vst.msk [vmem:[%s3 + $0x30] sm:$0xff] %vm1926, %v2409
  %2426 = vst.msk [vmem:[%s3 + $0x38] sm:$0xff] %vm1926, %v2410
  %2427 = vst.msk [vmem:[%s3 + $0x40] sm:$0xff] %vm1926, %v2411
  %2428 = vst.msk [vmem:[%s3 + $0x48] sm:$0xff] %vm1926, %v2412
  %2429 = vst.msk [vmem:[%s3 + $0x50] sm:$0xff] %vm1926, %v2413
  %2430 = vst.msk [vmem:[%s3 + $0x58] sm:$0xff] %vm1926, %v2414
  %2431 = vst.msk [vmem:[%s3 + $0x60] sm:$0xff] %vm1926, %v2415
  %2432 = vst.msk [vmem:[%s3 + $0x68] sm:$0xff] %vm1926, %v2416
  %2433 = vst.msk [vmem:[%s3 + $0x70] sm:$0xff] %vm1926, %v2417
  %2434 = vst.msk [vmem:[%s3 + $0x78] sm:$0xff] %vm1926, %v2418
  // Predicated region
  $region14: #{fused_relu_conv_bn_relu.1} parent=0 // pred_check
    _
  $region15: #{fused_relu_conv_bn_relu.1} parent=0 // pred_check_branch
    %2436 = sbr.rel (0) target = $region17
  $region16: #{fused_relu_conv_bn_relu.1} parent=0 // pred_region
    _
  $region17: #{fused_relu_conv_bn_relu.1} parent=0 // pred_fallthru
    _
  // Predicated region
  $region18: #{fused_relu_conv_bn_relu.1} parent=0 // pred_check
    _
  $region19: #{fused_relu_conv_bn_relu.1} parent=0 // pred_check_branch
    %2438 = sbr.rel (0) target = $region21
  $region20: #{fused_relu_conv_bn_relu.1} parent=0 // pred_region
    _
  $region21: #{fused_relu_conv_bn_relu.1} parent=0 // pred_fallthru
    _

</llo_original>
